<compile_context>
chip_gen: v7x
topology: tpu7x:2x2x1
jax: 0.10.0
libtpu: 0.0.40
codegen_flags: <defaults>
</compile_context>

<pallas_src>
import jax
import jax.numpy as jnp
from jax.experimental import pallas as pl
from jax.experimental.pallas import tpu as pltpu


# ----------------------------------------------------------------------------
# helpers
# ----------------------------------------------------------------------------
def _round_up(x, m):
    return ((x + m - 1) // m) * m


def _choose_tm(n_rows, tm):
    """Row tile: large (default 2048) to amortise the ~0.35us per-grid-step
    overhead, clamped to the (8-aligned) row count.  If that leaves an odd
    number (>1) of grid steps, shrink the tile so the step count is even and
    v7x's two TensorCores split the parallel axis evenly (no-op on v5e/v6e)."""
    tm = max(8, min(tm, _round_up(n_rows, 8)))
    steps = pl.cdiv(n_rows, tm)
    if steps > 1 and steps % 2 == 1:
        tm = max(8, _round_up(pl.cdiv(n_rows, steps + 1), 8))
    return tm


def _block_diag(mats):
    rows = sum(m.shape[0] for m in mats)
    cols = sum(m.shape[1] for m in mats)
    out = jnp.zeros((rows, cols), dtype=mats[0].dtype)
    r = c = 0
    for m in mats:
        out = out.at[r:r + m.shape[0], c:c + m.shape[1]].set(m)
        r += m.shape[0]
        c += m.shape[1]
    return out


# ----------------------------------------------------------------------------
# Pallas kernel: fused 4-head MLP with concat-fusion of the 3 input chunks
# ----------------------------------------------------------------------------
def _fused_heads_kernel(x1_ref, x2_ref, x3_ref,
                        w0a_ref, w0b_ref, w0c_ref, b0_ref, *refs):
    # refs = (w1, b1, ..., wL, bL, o_ref); weights are compute-dtype (bf16 by
    # default), biases f32, accumulation f32 throughout.
    o_ref = refs[-1]
    wb = refs[:-1]
    n_rest = len(wb) // 2
    cdt = w0a_ref.dtype  # compute dtype

    # Layer 0: fused concat -> x1@W0a + x2@W0b + x3@W0c on the bf16 MXU path.
    acc = (jnp.dot(x1_ref[...].astype(cdt), w0a_ref[...],
                   preferred_element_type=jnp.float32)
           + jnp.dot(x2_ref[...].astype(cdt), w0b_ref[...],
                     preferred_element_type=jnp.float32)
           + jnp.dot(x3_ref[...].astype(cdt), w0c_ref[...],
                     preferred_element_type=jnp.float32)
           + b0_ref[...])

    # Remaining (block-diagonal) layers; cast-then-ReLU in the compute dtype
    # (bit-identical to ReLU-then-cast, cheaper on v6e/v7x bf16 VALUs), ReLU
    # applied after every layer except the last — matches build_layers().
    for li in range(n_rest):
        w_ref = wb[2 * li]
        b_ref = wb[2 * li + 1]
        h = jnp.maximum(acc.astype(w_ref.dtype), 0)
        acc = jnp.dot(h, w_ref[...],
                      preferred_element_type=jnp.float32) + b_ref[...]

    o_ref[...] = acc.astype(o_ref.dtype)


def fused_heads_pallas(x1, x2, x3, packed, *, tm=2048):
    """Run the fused 4-head MLP on rows of concat([x1, x2, x3], axis=1).
    Returns an (N, d_out_pad) array; real columns are the first d_out_real."""
    n_rows = x1.shape[0]
    d1, d2, d3 = x1.shape[1], x2.shape[1], x3.shape[1]
    w0, b0 = packed['first_w'], packed['first_b']
    assert w0.shape[0] == d1 + d2 + d3, "input split mismatch vs packed W0"
    rest = packed['rest']
    d_out = (rest[-1][1] if rest else b0).shape[-1]   # padded (multiple of 128)

    tm = _choose_tm(n_rows, tm)
    grid = (pl.cdiv(n_rows, tm),)

    # Row-split of the first-layer weight fuses torch.cat(dim=1) into the kernel.
    w0a, w0b, w0c = w0[:d1], w0[d1:d1 + d2], w0[d1 + d2:]

    def row_spec(d):
        return pl.BlockSpec((tm, d), lambda i: (i, 0))

    def const_spec(shape):
        # Grid-invariant block; Pallas skips the re-fetch when the block index
        # does not change between consecutive grid steps.
        nd = len(shape)
        return pl.BlockSpec(shape, lambda i, _nd=nd: (0,) * _nd)

    flat = [x1, x2, x3, w0a, w0b, w0c, b0]
    in_specs = [row_spec(d1), row_spec(d2), row_spec(d3),
                const_spec(w0a.shape), const_spec(w0b.shape),
                const_spec(w0c.shape), const_spec(b0.shape)]
    for (w, b) in rest:
        flat += [w, b]
        in_specs += [const_spec(w.shape), const_spec(b.shape)]

    # Explicit VMEM budget (v7x: 64 MiB physical / 32 MiB scoped default).
    # Rough per-row bytes: double-buffered f32 inputs + f32 output block +
    # activation copies; plus weights and fixed headroom.
    bytes_per_row = 4 * (d1 + d2 + d3) + 8 * d_out + 6 * 128
    vmem_budget = min(48 << 20,
                      max(16 << 20,
                          _round_up(2 * tm * bytes_per_row + (4 << 20), 1 << 20)))

    return pl.pallas_call(
        _fused_heads_kernel,
        out_shape=jax.ShapeDtypeStruct((n_rows, d_out), jnp.float32),
        grid_spec=pltpu.PrefetchScalarGridSpec(
            num_scalar_prefetch=0,
            grid=grid,
            in_specs=in_specs,
            out_specs=pl.BlockSpec((tm, d_out), lambda i: (i, 0)),
        ),
        compiler_params=pltpu.CompilerParams(
            dimension_semantics=("parallel",),
            vmem_limit_bytes=vmem_budget),
    )(*flat)


# ----------------------------------------------------------------------------
# Parameter construction mirroring build_layers() in the PyTorch module
# ----------------------------------------------------------------------------
def build_layers_params(key, inputsize, outputsize, features):
    """Returns list of (W, b) with W stored as (in, out) (== torch W.T)."""
    dims = [inputsize] + list(features) + [outputsize]
    params = []
    for i in range(len(dims) - 1):
        key, kw, kb = jax.random.split(key, 3)
        bound = 1.0 / jnp.sqrt(dims[i])
        w = jax.random.uniform(kw, (dims[i], dims[i + 1]),
                               minval=-bound, maxval=bound, dtype=jnp.float32)
        b = jax.random.uniform(kb, (1, dims[i + 1]),
                               minval=-bound, maxval=bound, dtype=jnp.float32)
        params.append((w, b))
    return params, key


def pack_heads(head_param_lists, compute_dtype=jnp.bfloat16, pad_out_to=128):
    """Pack several same-depth MLP heads into one wide MLP:
       layer 0 -> hstack, deeper layers -> block-diagonal, final layer output
       zero-padded to a multiple of `pad_out_to` lanes (lane-dense writeback)."""
    depths = {len(p) for p in head_param_lists}
    # TODO(synk): if per-head layer counts ever differ, fall back to one fused
    # kernel per head instead of block-diagonal packing.
    assert len(depths) == 1, "all heads must have the same number of layers"
    depth = depths.pop()

    first_w = jnp.concatenate([p[0][0] for p in head_param_lists],
                              axis=1).astype(compute_dtype)
    first_b = jnp.concatenate([p[0][1] for p in head_param_lists],
                              axis=1).astype(jnp.float32)
    rest = []
    for li in range(1, depth):
        w = _block_diag([p[li][0] for p in head_param_lists]).astype(compute_dtype)
        b = jnp.concatenate([p[li][1] for p in head_param_lists],
                            axis=1).astype(jnp.float32)
        rest.append([w, b])

    out_widths = [p[-1][1].shape[-1] for p in head_param_lists]
    d_out_real = sum(out_widths)
    d_out_pad = _round_up(d_out_real, pad_out_to)
    pad = d_out_pad - d_out_real
    if pad:
        if rest:
            w, b = rest[-1]
            rest[-1] = [jnp.pad(w, ((0, 0), (0, pad))),
                        jnp.pad(b, ((0, 0), (0, pad)))]
        else:
            first_w = jnp.pad(first_w, ((0, 0), (0, pad)))
            first_b = jnp.pad(first_b, ((0, 0), (0, pad)))
    rest = [tuple(r) for r in rest]
    return {'first_w': first_w, 'first_b': first_b, 'rest': rest,
            'out_widths': out_widths,
            'd_out_real': d_out_real, 'd_out_pad': d_out_pad}


class MLPFNetPallas:
    """JAX/Pallas re-implementation of MLPFNet.forward (the 'cells' branch)."""

    def __init__(self, config, key, compute_dtype=jnp.bfloat16, tm=2048):
        self.config = config
        self.tm = tm
        om = config['output model']
        self.raw = {}      # node_type -> [class, charge, pos, energy] f32 params
        self.packed = {}   # node_type -> fused/packed params
        for node_type in ['cells', 'tracks']:
            insz = om[node_type + ' node inputsize']
            heads = []
            for outsz, feat_key in (
                    (om['n classes'] + 1, 'node classifer layers'),
                    (om['n charge classes'], 'charge classifier layers'),
                    (3, 'prod position layers'),
                    (1, 'energy prediction layers')):
                p, key = build_layers_params(key, insz, outsz, om[feat_key])
                heads.append(p)
            self.raw[node_type] = heads
            self.packed[node_type] = pack_heads(heads, compute_dtype=compute_dtype)

    def forward(self, g):
        for ntype in ['cells']:   # matches the PyTorch forward (tracks unused)
            nd = g[ntype]
            packed = self.packed[ntype]
            out = fused_heads_pallas(nd['node features'], nd['hidden rep 2'],
                                     nd['global rep 2'], packed, tm=self.tm)
            offs = [0]
            for w in packed['out_widths']:
                offs.append(offs[-1] + w)
            nd['class pred'] = out[:, offs[0]:offs[1]]
            nd['charge pred'] = out[:, offs[1]:offs[2]]
            nd['pos pred'] = out[:, offs[2]:offs[3]]
            nd['e pred'] = out[:, offs[3]:offs[4]].reshape(-1)   # == .view(-1)
        return g


# ----------------------------------------------------------------------------
# Pure-JAX references for correctness checking
# ----------------------------------------------------------------------------
def mlp_ref(x, params):
    h = x
    for li, (w, b) in enumerate(params):
        h = h @ w + b
        if li < len(params) - 1:
            h = jnp.maximum(h, 0.0)
    return h


def fused_ref(x1, x2, x3, packed):
    """Same math as the fused kernel (incl. the bf16 casts), in plain JAX."""
    w0, b0 = packed['first_w'], packed['first_b']
    cdt = w0.dtype
    d1, d2 = x1.shape[1], x2.shape[1]
    acc = (jnp.dot(x1.astype(cdt), w0[:d1], preferred_element_type=jnp.float32)
           + jnp.dot(x2.astype(cdt), w0[d1:d1 + d2], preferred_element_type=jnp.float32)
           + jnp.dot(x3.astype(cdt), w0[d1 + d2:], preferred_element_type=jnp.float32)
           + b0)
    for (w, b) in packed['rest']:
        h = jnp.maximum(acc.astype(w.dtype), 0)
        acc = jnp.dot(h, w, preferred_element_type=jnp.float32) + b
    return acc


if __name__ == "__main__":
    key = jax.random.PRNGKey(0)

    # Small, forward-consistent shapes; N deliberately NOT a multiple of the
    # small test tile so the cdiv grid + masked tail block is exercised.
    N = 200
    d_feat, d_hidden, d_glob = 6, 16, 10
    inputsize = d_feat + d_hidden + d_glob   # 32

    config = {
        'output model': {
            'cells node inputsize': inputsize,
            'tracks node inputsize': inputsize,
            'n classes': 3,
            'n charge classes': 3,
            'node classifer layers': [32, 32],
            'charge classifier layers': [32, 32],
            'energy prediction layers': [32, 32],
            'prod position layers': [32, 32],
        }
    }

    key, k_model, k1, k2, k3 = jax.random.split(key, 5)
    model = MLPFNetPallas(config, k_model)   # default: bf16 compute

    x1 = jax.random.normal(k1, (N, d_feat), dtype=jnp.float32)
    x2 = jax.random.normal(k2, (N, d_hidden), dtype=jnp.float32)
    x3 = jax.random.normal(k3, (N, d_glob), dtype=jnp.float32)
    g = {'cells': {'node features': x1, 'hidden rep 2': x2, 'global rep 2': x3}}

    g = model.forward(g)
    for name in ('class pred', 'charge pred', 'pos pred', 'e pred'):
        jax.block_until_ready(g['cells'][name])

    data2 = jnp.concatenate([x1, x2, x3], axis=1)
    refs_f32 = [mlp_ref(data2, p) for p in model.raw['cells']]

    # --- check 1: exact forward semantics (same fused kernel, pure f32 path) ---
    packed_f32 = pack_heads(model.raw['cells'], compute_dtype=jnp.float32)
    offs = [0]
    for w in packed_f32['out_widths']:
        offs.append(offs[-1] + w)
    out_f32 = fused_heads_pallas(x1, x2, x3, packed_f32, tm=model.tm)
    for hi, ref in enumerate(refs_f32):
        got = out_f32[:, offs[hi]:offs[hi + 1]]
        assert got.shape == ref.shape, f"shape mismatch head {hi}"
        assert jnp.allclose(got, ref, atol=1e-4, rtol=1e-4), f"f32 head {hi}"
    # padded lanes must be exactly zero
    assert jnp.all(out_f32[:, packed_f32['d_out_real']:] == 0.0)

    # --- check 2: multi-step grid (small tile, even step count, masked tail) ---
    out_f32_multi = fused_heads_pallas(x1, x2, x3, packed_f32, tm=64)
    for hi, ref in enumerate(refs_f32):
        got = out_f32_multi[:, offs[hi]:offs[hi + 1]]
        assert jnp.allclose(got, ref, atol=1e-4, rtol=1e-4), f"multi-step head {hi}"

    # --- check 3: default (bf16) forward path ---
    got_all = jnp.concatenate(
        [g['cells']['class pred'], g['cells']['charge pred'],
         g['cells']['pos pred'], g['cells']['e pred'][:, None]], axis=1)
    d_real = model.packed['cells']['d_out_real']
    matched = fused_ref(x1, x2, x3, model.packed['cells'])[:, :d_real]
    assert jnp.allclose(got_all, matched, atol=2e-2, rtol=2e-2), "bf16 vs matched ref"
    ref_all = jnp.concatenate(refs_f32, axis=1)
    assert jnp.allclose(got_all, ref_all, atol=1e-1, rtol=1e-1), "bf16 vs f32 ref"
    assert g['cells']['e pred'].shape == (N,)

    print("KERNEL_OK")
</pallas_src>

<mosaic_0001>
module attributes {stable_mosaic.version = 11 : i64} {
  func.func @_fused_heads_kernel(%arg0: i32, %arg1: memref<200x6xf32, #tpu.memory_space<vmem>>, %arg2: memref<200x16xf32, #tpu.memory_space<vmem>>, %arg3: memref<200x10xf32, #tpu.memory_space<vmem>>, %arg4: memref<6x128xbf16, #tpu.memory_space<vmem>>, %arg5: memref<16x128xbf16, #tpu.memory_space<vmem>>, %arg6: memref<10x128xbf16, #tpu.memory_space<vmem>>, %arg7: memref<1x128xf32, #tpu.memory_space<vmem>>, %arg8: memref<128x128xbf16, #tpu.memory_space<vmem>>, %arg9: memref<1x128xf32, #tpu.memory_space<vmem>>, %arg10: memref<128x128xbf16, #tpu.memory_space<vmem>>, %arg11: memref<1x128xf32, #tpu.memory_space<vmem>>, %arg12: memref<200x128xf32, #tpu.memory_space<vmem>>) attributes {dimension_semantics = [#tpu.dimension_semantics<parallel>], iteration_bounds = array<i64: 1>, scalar_prefetch = 0 : i64, scratch_operands = 0 : i64, tpu.core_type = #tpu.core_type<tc>, window_params = [{transform_indices = @transform_0, window_bounds = array<i64: 200, 6>}, {transform_indices = @transform_1, window_bounds = array<i64: 200, 16>}, {transform_indices = @transform_2, window_bounds = array<i64: 200, 10>}, {pipeline_mode = #tpu.pipeline_mode<synchronous>, transform_indices = @transform_3, window_bounds = array<i64: 6, 128>}, {pipeline_mode = #tpu.pipeline_mode<synchronous>, transform_indices = @transform_4, window_bounds = array<i64: 16, 128>}, {pipeline_mode = #tpu.pipeline_mode<synchronous>, transform_indices = @transform_5, window_bounds = array<i64: 10, 128>}, {pipeline_mode = #tpu.pipeline_mode<synchronous>, transform_indices = @transform_6, window_bounds = array<i64: 1, 128>}, {pipeline_mode = #tpu.pipeline_mode<synchronous>, transform_indices = @transform_7, window_bounds = array<i64: 128, 128>}, {pipeline_mode = #tpu.pipeline_mode<synchronous>, transform_indices = @transform_8, window_bounds = array<i64: 1, 128>}, {pipeline_mode = #tpu.pipeline_mode<synchronous>, transform_indices = @transform_9, window_bounds = array<i64: 128, 128>}, {pipeline_mode = #tpu.pipeline_mode<synchronous>, transform_indices = @transform_10, window_bounds = array<i64: 1, 128>}, {transform_indices = @transform_11, window_bounds = array<i64: 200, 128>}]} {
    %c0 = arith.constant 0 : index
    %c0_0 = arith.constant 0 : index
    %0 = vector.load %arg1[%c0, %c0_0] : memref<200x6xf32, #tpu.memory_space<vmem>>, vector<200x6xf32>
    %1 = arith.truncf %0 : vector<200x6xf32> to vector<200x6xbf16>
    %c0_1 = arith.constant 0 : index
    %c0_2 = arith.constant 0 : index
    %2 = vector.load %arg4[%c0_1, %c0_2] : memref<6x128xbf16, #tpu.memory_space<vmem>>, vector<6x128xbf16>
    %cst = arith.constant dense<0.000000e+00> : vector<200x128xf32>
    %3 = tpu.matmul %1, %2, %cst {dimension_numbers = #tpu.dot_dimension_numbers<[1], [0], [0], [1], [0, 0, 1, 1], [], []>} : vector<200x6xbf16>, vector<6x128xbf16>, vector<200x128xf32> -> vector<200x128xf32>
    %c0_3 = arith.constant 0 : index
    %c0_4 = arith.constant 0 : index
    %4 = vector.load %arg2[%c0_3, %c0_4] : memref<200x16xf32, #tpu.memory_space<vmem>>, vector<200x16xf32>
    %5 = arith.truncf %4 : vector<200x16xf32> to vector<200x16xbf16>
    %c0_5 = arith.constant 0 : index
    %c0_6 = arith.constant 0 : index
    %6 = vector.load %arg5[%c0_5, %c0_6] : memref<16x128xbf16, #tpu.memory_space<vmem>>, vector<16x128xbf16>
    %cst_7 = arith.constant dense<0.000000e+00> : vector<200x128xf32>
    %7 = tpu.matmul %5, %6, %cst_7 {dimension_numbers = #tpu.dot_dimension_numbers<[1], [0], [0], [1], [0, 0, 1, 1], [], []>} : vector<200x16xbf16>, vector<16x128xbf16>, vector<200x128xf32> -> vector<200x128xf32>
    %8 = arith.addf %3, %7 : vector<200x128xf32>
    %c0_8 = arith.constant 0 : index
    %c0_9 = arith.constant 0 : index
    %9 = vector.load %arg3[%c0_8, %c0_9] : memref<200x10xf32, #tpu.memory_space<vmem>>, vector<200x10xf32>
    %10 = arith.truncf %9 : vector<200x10xf32> to vector<200x10xbf16>
    %c0_10 = arith.constant 0 : index
    %c0_11 = arith.constant 0 : index
    %11 = vector.load %arg6[%c0_10, %c0_11] : memref<10x128xbf16, #tpu.memory_space<vmem>>, vector<10x128xbf16>
    %cst_12 = arith.constant dense<0.000000e+00> : vector<200x128xf32>
    %12 = tpu.matmul %10, %11, %cst_12 {dimension_numbers = #tpu.dot_dimension_numbers<[1], [0], [0], [1], [0, 0, 1, 1], [], []>} : vector<200x10xbf16>, vector<10x128xbf16>, vector<200x128xf32> -> vector<200x128xf32>
    %13 = arith.addf %8, %12 : vector<200x128xf32>
    %c0_13 = arith.constant 0 : index
    %c0_14 = arith.constant 0 : index
    %14 = vector.load %arg7[%c0_13, %c0_14] : memref<1x128xf32, #tpu.memory_space<vmem>>, vector<1x128xf32>
    %15 = vector.broadcast %14 : vector<1x128xf32> to vector<200x128xf32>
    %16 = arith.addf %13, %15 : vector<200x128xf32>
    %17 = arith.truncf %16 : vector<200x128xf32> to vector<200x128xbf16>
    %cst_15 = arith.constant 0.000000e+00 : bf16
    %18 = vector.broadcast %cst_15 : bf16 to vector<200x128xbf16>
    %19 = arith.maximumf %17, %18 : vector<200x128xbf16>
    %c0_16 = arith.constant 0 : index
    %c0_17 = arith.constant 0 : index
    %20 = vector.load %arg8[%c0_16, %c0_17] : memref<128x128xbf16, #tpu.memory_space<vmem>>, vector<128x128xbf16>
    %cst_18 = arith.constant dense<0.000000e+00> : vector<200x128xf32>
    %21 = tpu.matmul %19, %20, %cst_18 {dimension_numbers = #tpu.dot_dimension_numbers<[1], [0], [0], [1], [0, 0, 1, 1], [], []>} : vector<200x128xbf16>, vector<128x128xbf16>, vector<200x128xf32> -> vector<200x128xf32>
    %c0_19 = arith.constant 0 : index
    %c0_20 = arith.constant 0 : index
    %22 = vector.load %arg9[%c0_19, %c0_20] : memref<1x128xf32, #tpu.memory_space<vmem>>, vector<1x128xf32>
    %23 = vector.broadcast %22 : vector<1x128xf32> to vector<200x128xf32>
    %24 = arith.addf %21, %23 : vector<200x128xf32>
    %25 = arith.truncf %24 : vector<200x128xf32> to vector<200x128xbf16>
    %cst_21 = arith.constant 0.000000e+00 : bf16
    %26 = vector.broadcast %cst_21 : bf16 to vector<200x128xbf16>
    %27 = arith.maximumf %25, %26 : vector<200x128xbf16>
    %c0_22 = arith.constant 0 : index
    %c0_23 = arith.constant 0 : index
    %28 = vector.load %arg10[%c0_22, %c0_23] : memref<128x128xbf16, #tpu.memory_space<vmem>>, vector<128x128xbf16>
    %cst_24 = arith.constant dense<0.000000e+00> : vector<200x128xf32>
    %29 = tpu.matmul %27, %28, %cst_24 {dimension_numbers = #tpu.dot_dimension_numbers<[1], [0], [0], [1], [0, 0, 1, 1], [], []>} : vector<200x128xbf16>, vector<128x128xbf16>, vector<200x128xf32> -> vector<200x128xf32>
    %c0_25 = arith.constant 0 : index
    %c0_26 = arith.constant 0 : index
    %30 = vector.load %arg11[%c0_25, %c0_26] : memref<1x128xf32, #tpu.memory_space<vmem>>, vector<1x128xf32>
    %31 = vector.broadcast %30 : vector<1x128xf32> to vector<200x128xf32>
    %32 = arith.addf %29, %31 : vector<200x128xf32>
    %c0_27 = arith.constant 0 : index
    %c0_28 = arith.constant 0 : index
    %33 = vector.load %arg12[%c0_27, %c0_28] : memref<200x128xf32, #tpu.memory_space<vmem>>, vector<200x128xf32>
    tpu.vector_store %arg12[%c0_27, %c0_28], %32 {strides = array<i32>} : memref<200x128xf32, #tpu.memory_space<vmem>>, vector<200x128xf32>,
    return
  }
  func.func @transform_0(%arg0: i32) -> (i32, i32) {
    %c0_i32 = arith.constant 0 : i32
    %c0_i32_0 = arith.constant 0 : i32
    return %arg0, %c0_i32 : i32, i32
  }
  func.func @transform_1(%arg0: i32) -> (i32, i32) {
    %c0_i32 = arith.constant 0 : i32
    %c0_i32_0 = arith.constant 0 : i32
    return %arg0, %c0_i32 : i32, i32
  }
  func.func @transform_2(%arg0: i32) -> (i32, i32) {
    %c0_i32 = arith.constant 0 : i32
    %c0_i32_0 = arith.constant 0 : i32
    return %arg0, %c0_i32 : i32, i32
  }
  func.func @transform_3(%arg0: i32) -> (i32, i32) {
    %c0_i32 = arith.constant 0 : i32
    %c0_i32_0 = arith.constant 0 : i32
    %c0_i32_1 = arith.constant 0 : i32
    return %c0_i32, %c0_i32_0 : i32, i32
  }
  func.func @transform_4(%arg0: i32) -> (i32, i32) {
    %c0_i32 = arith.constant 0 : i32
    %c0_i32_0 = arith.constant 0 : i32
    %c0_i32_1 = arith.constant 0 : i32
    return %c0_i32, %c0_i32_0 : i32, i32
  }
  func.func @transform_5(%arg0: i32) -> (i32, i32) {
    %c0_i32 = arith.constant 0 : i32
    %c0_i32_0 = arith.constant 0 : i32
    %c0_i32_1 = arith.constant 0 : i32
    return %c0_i32, %c0_i32_0 : i32, i32
  }
  func.func @transform_6(%arg0: i32) -> (i32, i32) {
    %c0_i32 = arith.constant 0 : i32
    %c0_i32_0 = arith.constant 0 : i32
    %c0_i32_1 = arith.constant 0 : i32
    return %c0_i32, %c0_i32_0 : i32, i32
  }
  func.func @transform_7(%arg0: i32) -> (i32, i32) {
    %c0_i32 = arith.constant 0 : i32
    %c0_i32_0 = arith.constant 0 : i32
    %c0_i32_1 = arith.constant 0 : i32
    return %c0_i32, %c0_i32_0 : i32, i32
  }
  func.func @transform_8(%arg0: i32) -> (i32, i32) {
    %c0_i32 = arith.constant 0 : i32
    %c0_i32_0 = arith.constant 0 : i32
    %c0_i32_1 = arith.constant 0 : i32
    return %c0_i32, %c0_i32_0 : i32, i32
  }
  func.func @transform_9(%arg0: i32) -> (i32, i32) {
    %c0_i32 = arith.constant 0 : i32
    %c0_i32_0 = arith.constant 0 : i32
    %c0_i32_1 = arith.constant 0 : i32
    return %c0_i32, %c0_i32_0 : i32, i32
  }
  func.func @transform_10(%arg0: i32) -> (i32, i32) {
    %c0_i32 = arith.constant 0 : i32
    %c0_i32_0 = arith.constant 0 : i32
    %c0_i32_1 = arith.constant 0 : i32
    return %c0_i32, %c0_i32_0 : i32, i32
  }
  func.func @transform_11(%arg0: i32) -> (i32, i32) {
    %c0_i32 = arith.constant 0 : i32
    %c0_i32_0 = arith.constant 0 : i32
    return %arg0, %c0_i32 : i32, i32
  }
}

</mosaic_0001>

<llo_original>
// kernel: tpu_custom_call.1
$region0: #{tpu_custom_call.1}
  #allocation0 [shape = 'u32[]', space=smem, size = 0x4, offset = 0x4, fixed_abs, tag = 'smem constant byte address 0x4 - core index']
  #allocation1 [shape = 'u32[144,128]{1,0:T(1,128)}', space=vmem, size = 0x12000, scoped, tag = 'internal scratch']
  %s0 = inlined_call_operand.vmem [shape: f32[200,6], index: 0, kind: input, shape index: {}]
  %s1 = inlined_call_operand.vmem [shape: f32[200,16], index: 1, kind: input, shape index: {}]
  %s2 = inlined_call_operand.vmem [shape: f32[200,10], index: 2, kind: input, shape index: {}]
  %s3 = inlined_call_operand.vmem [shape: bf16[6,128], index: 3, kind: input, shape index: {}]
  %s4 = inlined_call_operand.vmem [shape: bf16[16,128], index: 4, kind: input, shape index: {}]
  %s5 = inlined_call_operand.vmem [shape: bf16[10,128], index: 5, kind: input, shape index: {}]
  %s6 = inlined_call_operand.vmem [shape: f32[1,128], index: 6, kind: input, shape index: {}]
  %s7 = inlined_call_operand.vmem [shape: bf16[128,128], index: 7, kind: input, shape index: {}]
  %s8 = inlined_call_operand.vmem [shape: f32[1,128], index: 8, kind: input, shape index: {}]
  %s9 = inlined_call_operand.vmem [shape: bf16[128,128], index: 9, kind: input, shape index: {}]
  %s10 = inlined_call_operand.vmem [shape: f32[1,128], index: 10, kind: input, shape index: {}]
  %s11 = inlined_call_operand.hbm [shape: f32[200,128], index: 11, kind: output, shape index: {}]
  %s12 = sld [smem:[#allocation0]]
  $region54: #{tpu_custom_call.1} parent=0
    _
  %s14 = ssub.s32 1, %s12
  %s15 = scalar_select 0, %s14, %s12
  $region1: #{tpu_custom_call.1} parent=0
    #allocation2 [shape = 'u8[102400]{0}', space=vmem, size = 0x19000, scoped, tag = 'output window, operand 0, single buffered']
    #allocation3 [shape = 's32[1]{0}', space=sflag, size = 0x4, scoped, tag = 'scoped memory for tpu_custom_call.1']
    %16 = vsyncpa [#allocation3], 0
    // Predicated region
    $region2: #{tpu_custom_call.1} parent=1 // pred_check
      _
    $region3: #{tpu_custom_call.1} parent=1 // pred_check_branch
      %18 = sbr.rel (0) target = $region5
    $region4: #{tpu_custom_call.1} parent=1 // pred_region
      _
    $region5: #{tpu_custom_call.1} parent=1 // pred_fallthru
      _
    // Predicated region
    $region6: #{tpu_custom_call.1} parent=1 // pred_check
      _
    $region7: #{tpu_custom_call.1} parent=1 // pred_check_branch
      %20 = sbr.rel (0) target = $region9
    $region8: #{tpu_custom_call.1} parent=1 // pred_region
      _
    $region9: #{tpu_custom_call.1} parent=1 // pred_fallthru
      _
    // Predicated region
    $region10: #{tpu_custom_call.1} parent=1 // pred_check
      _
    $region11: #{tpu_custom_call.1} parent=1 // pred_check_branch
      %22 = sbr.rel (0) target = $region13
    $region12: #{tpu_custom_call.1} parent=1 // pred_region
      _
    $region13: #{tpu_custom_call.1} parent=1 // pred_fallthru
      _
    // Predicated region
    $region14: #{tpu_custom_call.1} parent=1 // pred_check
      _
    $region15: #{tpu_custom_call.1} parent=1 // pred_check_branch
      %24 = sbr.rel (0) target = $region17
    $region16: #{tpu_custom_call.1} parent=1 // pred_region
      _
    $region17: #{tpu_custom_call.1} parent=1 // pred_fallthru
      _
    // Predicated region
    $region18: #{tpu_custom_call.1} parent=1 // pred_check
      _
    $region19: #{tpu_custom_call.1} parent=1 // pred_check_branch
      %26 = sbr.rel (0) target = $region21
    $region20: #{tpu_custom_call.1} parent=1 // pred_region
      _
    $region21: #{tpu_custom_call.1} parent=1 // pred_fallthru
      _
    // Predicated region
    $region22: #{tpu_custom_call.1} parent=1 // pred_check
      _
    $region23: #{tpu_custom_call.1} parent=1 // pred_check_branch
      %28 = sbr.rel (0) target = $region25
    $region24: #{tpu_custom_call.1} parent=1 // pred_region
      _
    $region25: #{tpu_custom_call.1} parent=1 // pred_fallthru
      _
    // Predicated region
    $region26: #{tpu_custom_call.1} parent=1 // pred_check
      _
    $region27: #{tpu_custom_call.1} parent=1 // pred_check_branch
      %30 = sbr.rel (0) target = $region29
    $region28: #{tpu_custom_call.1} parent=1 // pred_region
      _
    $region29: #{tpu_custom_call.1} parent=1 // pred_fallthru
      _
    // Predicated region
    $region30: #{tpu_custom_call.1} parent=1 // pred_check
      _
    $region31: #{tpu_custom_call.1} parent=1 // pred_check_branch
      %32 = sbr.rel (0) target = $region33
    $region32: #{tpu_custom_call.1} parent=1 // pred_region
      _
    $region33: #{tpu_custom_call.1} parent=1 // pred_fallthru
      _
    // Predicated region
    $region34: #{tpu_custom_call.1} parent=1 // pred_check
      _
    $region35: #{tpu_custom_call.1} parent=1 // pred_check_branch
      %34 = sbr.rel (0) target = $region37
    $region36: #{tpu_custom_call.1} parent=1 // pred_region
      _
    $region37: #{tpu_custom_call.1} parent=1 // pred_fallthru
      _
    // Predicated region
    $region38: #{tpu_custom_call.1} parent=1 // pred_check
      _
    $region39: #{tpu_custom_call.1} parent=1 // pred_check_branch
      %36 = sbr.rel (0) target = $region41
    $region40: #{tpu_custom_call.1} parent=1 // pred_region
      _
    $region41: #{tpu_custom_call.1} parent=1 // pred_fallthru
      _
    // Predicated region
    $region42: #{tpu_custom_call.1} parent=1 // pred_check
      _
    $region43: #{tpu_custom_call.1} parent=1 // pred_check_branch
      %38 = sbr.rel (0) target = $region45
    $region44: #{tpu_custom_call.1} parent=1 // pred_region
      _
    $region45: #{tpu_custom_call.1} parent=1 // pred_fallthru
      _
    %v40 = vld [vmem:[%s0] sm:$0xff]
    %v41 = vld [vmem:[%s0 + $0x8] sm:$0xff]
    %v42 = vld [vmem:[%s0 + $0x10] sm:$0xff]
    %v43 = vld [vmem:[%s0 + $0x18] sm:$0xff]
    %v44 = vld [vmem:[%s0 + $0x20] sm:$0xff]
    %v45 = vld [vmem:[%s0 + $0x28] sm:$0xff]
    %v46 = vld [vmem:[%s0 + $0x30] sm:$0xff]
    %v47 = vld [vmem:[%s0 + $0x38] sm:$0xff]
    %v48 = vld [vmem:[%s0 + $0x40] sm:$0xff]
    %v49 = vld [vmem:[%s0 + $0x48] sm:$0xff]
    %v50 = vld [vmem:[%s0 + $0x50] sm:$0xff]
    %v51 = vld [vmem:[%s0 + $0x58] sm:$0xff]
    %v52 = vld [vmem:[%s0 + $0x60] sm:$0xff]
    %v53 = vld [vmem:[%s0 + $0x68] sm:$0xff]
    %v54 = vld [vmem:[%s0 + $0x70] sm:$0xff]
    %v55 = vld [vmem:[%s0 + $0x78] sm:$0xff]
    %v56 = vld [vmem:[%s0 + $0x80] sm:$0xff]
    %v57 = vld [vmem:[%s0 + $0x88] sm:$0xff]
    %v58 = vld [vmem:[%s0 + $0x90] sm:$0xff]
    %v59 = vld [vmem:[%s0 + $0x98] sm:$0xff]
    %v60 = vld [vmem:[%s0 + $0xa0] sm:$0xff]
    %v61 = vld [vmem:[%s0 + $0xa8] sm:$0xff]
    %v62 = vld [vmem:[%s0 + $0xb0] sm:$0xff]
    %v63 = vld [vmem:[%s0 + $0xb8] sm:$0xff]
    %v64 = vld [vmem:[%s0 + $0xc0] sm:$0xff]
    %v65 = vpack.c.bf16 %v41, %v40
    %v66 = vpack.c.bf16 %v43, %v42
    %v67 = vpack.c.bf16 %v45, %v44
    %v68 = vpack.c.bf16 %v47, %v46
    %v69 = vpack.c.bf16 %v49, %v48
    %v70 = vpack.c.bf16 %v51, %v50
    %v71 = vpack.c.bf16 %v53, %v52
    %v72 = vpack.c.bf16 %v55, %v54
    %v73 = vpack.c.bf16 %v57, %v56
    %v74 = vpack.c.bf16 %v59, %v58
    %v75 = vpack.c.bf16 %v61, %v60
    %v76 = vpack.c.bf16 %v63, %v62
    %v77 = vpack.c.bf16 %v64, %v64
    %v78 = vld [vmem:[%s3] sm:$0x7]
    %v79 = vld [vmem:[%s1] sm:$0xff]
    %v80 = vld [vmem:[%s1 + $0x8] sm:$0xff]
    %v81 = vld [vmem:[%s1 + $0x10] sm:$0xff]
    %v82 = vld [vmem:[%s1 + $0x18] sm:$0xff]
    %v83 = vld [vmem:[%s1 + $0x20] sm:$0xff]
    %v84 = vld [vmem:[%s1 + $0x28] sm:$0xff]
    %v85 = vld [vmem:[%s1 + $0x30] sm:$0xff]
    %v86 = vld [vmem:[%s1 + $0x38] sm:$0xff]
    %v87 = vld [vmem:[%s1 + $0x40] sm:$0xff]
    %v88 = vld [vmem:[%s1 + $0x48] sm:$0xff]
    %v89 = vld [vmem:[%s1 + $0x50] sm:$0xff]
    %v90 = vld [vmem:[%s1 + $0x58] sm:$0xff]
    %v91 = vld [vmem:[%s1 + $0x60] sm:$0xff]
    %v92 = vld [vmem:[%s1 + $0x68] sm:$0xff]
    %v93 = vld [vmem:[%s1 + $0x70] sm:$0xff]
    %v94 = vld [vmem:[%s1 + $0x78] sm:$0xff]
    %v95 = vld [vmem:[%s1 + $0x80] sm:$0xff]
    %v96 = vld [vmem:[%s1 + $0x88] sm:$0xff]
    %v97 = vld [vmem:[%s1 + $0x90] sm:$0xff]
    %v98 = vld [vmem:[%s1 + $0x98] sm:$0xff]
    %v99 = vld [vmem:[%s1 + $0xa0] sm:$0xff]
    %v100 = vld [vmem:[%s1 + $0xa8] sm:$0xff]
    %v101 = vld [vmem:[%s1 + $0xb0] sm:$0xff]
    %v102 = vld [vmem:[%s1 + $0xb8] sm:$0xff]
    %v103 = vld [vmem:[%s1 + $0xc0] sm:$0xff]
    %v104 = vpack.c.bf16 %v80, %v79
    %v105 = vpack.c.bf16 %v82, %v81
    %v106 = vpack.c.bf16 %v84, %v83
    %v107 = vpack.c.bf16 %v86, %v85
    %v108 = vpack.c.bf16 %v88, %v87
    %v109 = vpack.c.bf16 %v90, %v89
    %v110 = vpack.c.bf16 %v92, %v91
    %v111 = vpack.c.bf16 %v94, %v93
    %v112 = vpack.c.bf16 %v96, %v95
    %v113 = vpack.c.bf16 %v98, %v97
    %v114 = vpack.c.bf16 %v100, %v99
    %v115 = vpack.c.bf16 %v102, %v101
    %v116 = vpack.c.bf16 %v103, %v103
    %v117 = vld [vmem:[%s4] sm:$0xf]
    %v118 = vld [vmem:[%s4 + $0x4] sm:$0xf]
    %v121 = vunpack.c.l.b16 %v117
    %v122 = vunpack.c.l.b16 %v118
    %v123 = vpack.c.b16 %v122, %v121
    %vm125 = vcmask 130048
    %v127 = vsel %vm125, %v104, 0
    %v130 = vsel %vm125, %v105, 0
    %v133 = vsel %vm125, %v106, 0
    %v136 = vsel %vm125, %v107, 0
    %v139 = vsel %vm125, %v108, 0
    %v142 = vsel %vm125, %v109, 0
    %v145 = vsel %vm125, %v110, 0
    %v148 = vsel %vm125, %v111, 0
    %v151 = vsel %vm125, %v112, 0
    %v154 = vsel %vm125, %v113, 0
    %v157 = vsel %vm125, %v114, 0
    %v160 = vsel %vm125, %v115, 0
    %v163 = vsel %vm125, %v116, 0
    %165 = vmatprep.subr.bf16.mxu0 0
    %166 = vmatpush1.bf16.msra.mxu0 %v123
    %167 = vmatprep.subr.bf16.mxu0 0
    %168 = vmatpush1.bf16.msra.mxu0 0
    %169 = vmatprep.subr.bf16.mxu0 0
    %170 = vmatpush1.bf16.msra.mxu0 0
    %171 = vmatprep.subr.bf16.mxu0 0
    %172 = vmatpush1.bf16.msra.mxu0 0
    %173 = vmatprep.subr.bf16.mxu0 0
    %174 = vmatpush1.bf16.msra.mxu0 0
    %175 = vmatprep.subr.bf16.mxu0 0
    %176 = vmatpush1.bf16.msra.mxu0 0
    %177 = vmatprep.subr.bf16.mxu0 0
    %178 = vmatpush1.bf16.msra.mxu0 0
    %179 = vmatprep.subr.bf16.mxu0 0
    %180 = vmatpush1.bf16.msra.mxu0 0
    %181 = vmatprep.subr.bf16.mxu0 0
    %182 = vmatpush1.bf16.msra.mxu0 0
    %183 = vmatprep.subr.bf16.mxu0 0
    %184 = vmatpush1.bf16.msra.mxu0 0
    %185 = vmatprep.subr.bf16.mxu0 0
    %186 = vmatpush1.bf16.msra.mxu0 0
    %187 = vmatprep.subr.bf16.mxu0 0
    %188 = vmatpush1.bf16.msra.mxu0 0
    %189 = vmatprep.subr.bf16.mxu0 0
    %190 = vmatpush1.bf16.msra.mxu0 0
    %191 = vmatprep.subr.bf16.mxu0 0
    %192 = vmatpush1.bf16.msra.mxu0 0
    %193 = vmatprep.subr.bf16.mxu0 0
    %194 = vmatpush1.bf16.msra.mxu0 0
    %195 = vmatprep.subr.bf16.mxu0 0
    %196 = vmatpush1.bf16.msra.mxu0 0
    %197 = vmatprep.mubr.bf16.mxu0 0
    %198 = vmatmul.mubr.bf16.gmra.mrb[0].mxu0 %v127
    %v199 = vpop.f32.mrb[0].mxu0
    %v200 = vadd.f32 0.0, %v199
    %v201 = vpop.f32.mrb[0].mxu0
    %v202 = vpop.f32.mrb[0].mxu0
    %v203 = vadd.f32 0.0, %v202
    %v204 = vpop.f32.mrb[0].mxu0
    %205 = vmatprep.mubr.bf16.mxu0 0
    %206 = vmatmul.mubr.bf16.gmra.mrb[0].mxu0 %v130
    %v207 = vpop.f32.mrb[0].mxu0
    %v208 = vadd.f32 0.0, %v207
    %v209 = vpop.f32.mrb[0].mxu0
    %v210 = vpop.f32.mrb[0].mxu0
    %v211 = vadd.f32 0.0, %v210
    %v212 = vpop.f32.mrb[0].mxu0
    %213 = vmatprep.mubr.bf16.mxu0 0
    %214 = vmatmul.mubr.bf16.gmra.mrb[0].mxu0 %v133
    %v215 = vpop.f32.mrb[0].mxu0
    %v216 = vadd.f32 0.0, %v215
    %v217 = vpop.f32.mrb[0].mxu0
    %v218 = vpop.f32.mrb[0].mxu0
    %v219 = vadd.f32 0.0, %v218
    %v220 = vpop.f32.mrb[0].mxu0
    %221 = vmatprep.mubr.bf16.mxu0 0
    %222 = vmatmul.mubr.bf16.gmra.mrb[0].mxu0 %v136
    %v223 = vpop.f32.mrb[0].mxu0
    %v224 = vadd.f32 0.0, %v223
    %v225 = vpop.f32.mrb[0].mxu0
    %v226 = vpop.f32.mrb[0].mxu0
    %v227 = vadd.f32 0.0, %v226
    %v228 = vpop.f32.mrb[0].mxu0
    %229 = vmatprep.mubr.bf16.mxu0 0
    %230 = vmatmul.mubr.bf16.gmra.mrb[0].mxu0 %v139
    %v231 = vpop.f32.mrb[0].mxu0
    %v232 = vadd.f32 0.0, %v231
    %v233 = vpop.f32.mrb[0].mxu0
    %v234 = vpop.f32.mrb[0].mxu0
    %v235 = vadd.f32 0.0, %v234
    %v236 = vpop.f32.mrb[0].mxu0
    %237 = vmatprep.mubr.bf16.mxu0 0
    %238 = vmatmul.mubr.bf16.gmra.mrb[0].mxu0 %v142
    %v239 = vpop.f32.mrb[0].mxu0
    %v240 = vadd.f32 0.0, %v239
    %v241 = vpop.f32.mrb[0].mxu0
    %v242 = vpop.f32.mrb[0].mxu0
    %v243 = vadd.f32 0.0, %v242
    %v244 = vpop.f32.mrb[0].mxu0
    %245 = vmatprep.mubr.bf16.mxu0 0
    %246 = vmatmul.mubr.bf16.gmra.mrb[0].mxu0 %v145
    %v247 = vpop.f32.mrb[0].mxu0
    %v248 = vadd.f32 0.0, %v247
    %v249 = vpop.f32.mrb[0].mxu0
    %v250 = vpop.f32.mrb[0].mxu0
    %v251 = vadd.f32 0.0, %v250
    %v252 = vpop.f32.mrb[0].mxu0
    %253 = vmatprep.mubr.bf16.mxu0 0
    %254 = vmatmul.mubr.bf16.gmra.mrb[0].mxu0 %v148
    %v255 = vpop.f32.mrb[0].mxu0
    %v256 = vadd.f32 0.0, %v255
    %v257 = vpop.f32.mrb[0].mxu0
    %v258 = vpop.f32.mrb[0].mxu0
    %v259 = vadd.f32 0.0, %v258
    %v260 = vpop.f32.mrb[0].mxu0
    %261 = vmatprep.mubr.bf16.mxu0 0
    %262 = vmatmul.mubr.bf16.gmra.mrb[0].mxu0 %v151
    %v263 = vpop.f32.mrb[0].mxu0
    %v264 = vadd.f32 0.0, %v263
    %v265 = vpop.f32.mrb[0].mxu0
    %v266 = vpop.f32.mrb[0].mxu0
    %v267 = vadd.f32 0.0, %v266
    %v268 = vpop.f32.mrb[0].mxu0
    %269 = vmatprep.mubr.bf16.mxu0 0
    %270 = vmatmul.mubr.bf16.gmra.mrb[0].mxu0 %v154
    %v271 = vpop.f32.mrb[0].mxu0
    %v272 = vadd.f32 0.0, %v271
    %v273 = vpop.f32.mrb[0].mxu0
    %v274 = vpop.f32.mrb[0].mxu0
    %v275 = vadd.f32 0.0, %v274
    %v276 = vpop.f32.mrb[0].mxu0
    %277 = vmatprep.mubr.bf16.mxu0 0
    %278 = vmatmul.mubr.bf16.gmra.mrb[0].mxu0 %v157
    %v279 = vpop.f32.mrb[0].mxu0
    %v280 = vadd.f32 0.0, %v279
    %v281 = vpop.f32.mrb[0].mxu0
    %v282 = vpop.f32.mrb[0].mxu0
    %v283 = vadd.f32 0.0, %v282
    %v284 = vpop.f32.mrb[0].mxu0
    %285 = vmatprep.mubr.bf16.mxu0 0
    %286 = vmatmul.mubr.bf16.gmra.mrb[0].mxu0 %v160
    %v287 = vpop.f32.mrb[0].mxu0
    %v288 = vadd.f32 0.0, %v287
    %v289 = vpop.f32.mrb[0].mxu0
    %v290 = vpop.f32.mrb[0].mxu0
    %v291 = vadd.f32 0.0, %v290
    %v292 = vpop.f32.mrb[0].mxu0
    %293 = vmatprep.mubr.bf16.mxu0 0
    %294 = vmatmul.mubr.bf16.gmra.mrb[0].mxu0 %v163
    %v295 = vpop.f32.mrb[0].mxu0
    %v296 = vadd.f32 0.0, %v295
    %v297 = vpop.f32.mrb[0].mxu0
    %v298 = vpop.f32.mrb[0].mxu0
    %v299 = vpop.f32.mrb[0].mxu0
    %300 = vdwg.mxu0
    %vm301 = vcmask 48128
    %v303 = vsel %vm301, %v65, 0
    %v306 = vsel %vm301, %v66, 0
    %v309 = vsel %vm301, %v67, 0
    %v312 = vsel %vm301, %v68, 0
    %v315 = vsel %vm301, %v69, 0
    %v318 = vsel %vm301, %v70, 0
    %v321 = vsel %vm301, %v71, 0
    %v324 = vsel %vm301, %v72, 0
    %v327 = vsel %vm301, %v73, 0
    %v330 = vsel %vm301, %v74, 0
    %v333 = vsel %vm301, %v75, 0
    %v336 = vsel %vm301, %v76, 0
    %v339 = vsel %vm301, %v77, 0
    %vm341 = vcmask 1042432
    %v343 = vsel %vm341, %v78, 0
    %345 = vmatprep.subr.bf16.mxu0 0
    %346 = vmatpush1.bf16.msra.mxu0 %v343
    %347 = vmatprep.subr.bf16.mxu0 0
    %348 = vmatpush1.bf16.msra.mxu0 0
    %349 = vmatprep.subr.bf16.mxu0 0
    %350 = vmatpush1.bf16.msra.mxu0 0
    %351 = vmatprep.subr.bf16.mxu0 0
    %352 = vmatpush1.bf16.msra.mxu0 0
    %353 = vmatprep.subr.bf16.mxu0 0
    %354 = vmatpush1.bf16.msra.mxu0 0
    %355 = vmatprep.subr.bf16.mxu0 0
    %356 = vmatpush1.bf16.msra.mxu0 0
    %357 = vmatprep.subr.bf16.mxu0 0
    %358 = vmatpush1.bf16.msra.mxu0 0
    %359 = vmatprep.subr.bf16.mxu0 0
    %360 = vmatpush1.bf16.msra.mxu0 0
    %361 = vmatprep.subr.bf16.mxu0 0
    %362 = vmatpush1.bf16.msra.mxu0 0
    %363 = vmatprep.subr.bf16.mxu0 0
    %364 = vmatpush1.bf16.msra.mxu0 0
    %365 = vmatprep.subr.bf16.mxu0 0
    %366 = vmatpush1.bf16.msra.mxu0 0
    %367 = vmatprep.subr.bf16.mxu0 0
    %368 = vmatpush1.bf16.msra.mxu0 0
    %369 = vmatprep.subr.bf16.mxu0 0
    %370 = vmatpush1.bf16.msra.mxu0 0
    %371 = vmatprep.subr.bf16.mxu0 0
    %372 = vmatpush1.bf16.msra.mxu0 0
    %373 = vmatprep.subr.bf16.mxu0 0
    %374 = vmatpush1.bf16.msra.mxu0 0
    %375 = vmatprep.subr.bf16.mxu0 0
    %376 = vmatpush1.bf16.msra.mxu0 0
    %377 = vmatprep.mubr.bf16.mxu0 0
    %378 = vmatmul.mubr.bf16.gmra.mrb[0].mxu0 %v303
    %v379 = vpop.f32.mrb[0].mxu0
    %v380 = vadd.f32 %v200, %v379
    %v381 = vpop.f32.mrb[0].mxu0
    %v382 = vpop.f32.mrb[0].mxu0
    %v383 = vadd.f32 %v203, %v382
    %v384 = vpop.f32.mrb[0].mxu0
    %385 = vmatprep.mubr.bf16.mxu0 0
    %386 = vmatmul.mubr.bf16.gmra.mrb[0].mxu0 %v306
    %v387 = vpop.f32.mrb[0].mxu0
    %v388 = vadd.f32 %v208, %v387
    %v389 = vpop.f32.mrb[0].mxu0
    %v390 = vpop.f32.mrb[0].mxu0
    %v391 = vadd.f32 %v211, %v390
    %v392 = vpop.f32.mrb[0].mxu0
    %393 = vmatprep.mubr.bf16.mxu0 0
    %394 = vmatmul.mubr.bf16.gmra.mrb[0].mxu0 %v309
    %v395 = vpop.f32.mrb[0].mxu0
    %v396 = vadd.f32 %v216, %v395
    %v397 = vpop.f32.mrb[0].mxu0
    %v398 = vpop.f32.mrb[0].mxu0
    %v399 = vadd.f32 %v219, %v398
    %v400 = vpop.f32.mrb[0].mxu0
    %401 = vmatprep.mubr.bf16.mxu0 0
    %402 = vmatmul.mubr.bf16.gmra.mrb[0].mxu0 %v312
    %v403 = vpop.f32.mrb[0].mxu0
    %v404 = vadd.f32 %v224, %v403
    %v405 = vpop.f32.mrb[0].mxu0
    %v406 = vpop.f32.mrb[0].mxu0
    %v407 = vadd.f32 %v227, %v406
    %v408 = vpop.f32.mrb[0].mxu0
    %409 = vmatprep.mubr.bf16.mxu0 0
    %410 = vmatmul.mubr.bf16.gmra.mrb[0].mxu0 %v315
    %v411 = vpop.f32.mrb[0].mxu0
    %v412 = vadd.f32 %v232, %v411
    %v413 = vpop.f32.mrb[0].mxu0
    %v414 = vpop.f32.mrb[0].mxu0
    %v415 = vadd.f32 %v235, %v414
    %v416 = vpop.f32.mrb[0].mxu0
    %417 = vmatprep.mubr.bf16.mxu0 0
    %418 = vmatmul.mubr.bf16.gmra.mrb[0].mxu0 %v318
    %v419 = vpop.f32.mrb[0].mxu0
    %v420 = vadd.f32 %v240, %v419
    %v421 = vpop.f32.mrb[0].mxu0
    %v422 = vpop.f32.mrb[0].mxu0
    %v423 = vadd.f32 %v243, %v422
    %v424 = vpop.f32.mrb[0].mxu0
    %425 = vmatprep.mubr.bf16.mxu0 0
    %426 = vmatmul.mubr.bf16.gmra.mrb[0].mxu0 %v321
    %v427 = vpop.f32.mrb[0].mxu0
    %v428 = vadd.f32 %v248, %v427
    %v429 = vpop.f32.mrb[0].mxu0
    %v430 = vpop.f32.mrb[0].mxu0
    %v431 = vadd.f32 %v251, %v430
    %v432 = vpop.f32.mrb[0].mxu0
    %433 = vmatprep.mubr.bf16.mxu0 0
    %434 = vmatmul.mubr.bf16.gmra.mrb[0].mxu0 %v324
    %v435 = vpop.f32.mrb[0].mxu0
    %v436 = vadd.f32 %v256, %v435
    %v437 = vpop.f32.mrb[0].mxu0
    %v438 = vpop.f32.mrb[0].mxu0
    %v439 = vadd.f32 %v259, %v438
    %v440 = vpop.f32.mrb[0].mxu0
    %441 = vmatprep.mubr.bf16.mxu0 0
    %442 = vmatmul.mubr.bf16.gmra.mrb[0].mxu0 %v327
    %v443 = vpop.f32.mrb[0].mxu0
    %v444 = vadd.f32 %v264, %v443
    %v445 = vpop.f32.mrb[0].mxu0
    %v446 = vpop.f32.mrb[0].mxu0
    %v447 = vadd.f32 %v267, %v446
    %v448 = vpop.f32.mrb[0].mxu0
    %449 = vmatprep.mubr.bf16.mxu0 0
    %450 = vmatmul.mubr.bf16.gmra.mrb[0].mxu0 %v330
    %v451 = vpop.f32.mrb[0].mxu0
    %v452 = vadd.f32 %v272, %v451
    %v453 = vpop.f32.mrb[0].mxu0
    %v454 = vpop.f32.mrb[0].mxu0
    %v455 = vadd.f32 %v275, %v454
    %v456 = vpop.f32.mrb[0].mxu0
    %457 = vmatprep.mubr.bf16.mxu0 0
    %458 = vmatmul.mubr.bf16.gmra.mrb[0].mxu0 %v333
    %v459 = vpop.f32.mrb[0].mxu0
    %v460 = vadd.f32 %v280, %v459
    %v461 = vpop.f32.mrb[0].mxu0
    %v462 = vpop.f32.mrb[0].mxu0
    %v463 = vadd.f32 %v283, %v462
    %v464 = vpop.f32.mrb[0].mxu0
    %465 = vmatprep.mubr.bf16.mxu0 0
    %466 = vmatmul.mubr.bf16.gmra.mrb[0].mxu0 %v336
    %v467 = vpop.f32.mrb[0].mxu0
    %v468 = vadd.f32 %v288, %v467
    %v469 = vpop.f32.mrb[0].mxu0
    %v470 = vpop.f32.mrb[0].mxu0
    %v471 = vadd.f32 %v291, %v470
    %v472 = vpop.f32.mrb[0].mxu0
    %473 = vmatprep.mubr.bf16.mxu0 0
    %474 = vmatmul.mubr.bf16.gmra.mrb[0].mxu0 %v339
    %v475 = vpop.f32.mrb[0].mxu0
    %v476 = vadd.f32 %v296, %v475
    %v477 = vpop.f32.mrb[0].mxu0
    %v478 = vpop.f32.mrb[0].mxu0
    %v479 = vpop.f32.mrb[0].mxu0
    %480 = vdwg.mxu0
    %v481 = vld [vmem:[%s2] sm:$0xff]
    %v482 = vld [vmem:[%s2 + $0x8] sm:$0xff]
    %v483 = vld [vmem:[%s2 + $0x10] sm:$0xff]
    %v484 = vld [vmem:[%s2 + $0x18] sm:$0xff]
    %v485 = vld [vmem:[%s2 + $0x20] sm:$0xff]
    %v486 = vld [vmem:[%s2 + $0x28] sm:$0xff]
    %v487 = vld [vmem:[%s2 + $0x30] sm:$0xff]
    %v488 = vld [vmem:[%s2 + $0x38] sm:$0xff]
    %v489 = vld [vmem:[%s2 + $0x40] sm:$0xff]
    %v490 = vld [vmem:[%s2 + $0x48] sm:$0xff]
    %v491 = vld [vmem:[%s2 + $0x50] sm:$0xff]
    %v492 = vld [vmem:[%s2 + $0x58] sm:$0xff]
    %v493 = vld [vmem:[%s2 + $0x60] sm:$0xff]
    %v494 = vld [vmem:[%s2 + $0x68] sm:$0xff]
    %v495 = vld [vmem:[%s2 + $0x70] sm:$0xff]
    %v496 = vld [vmem:[%s2 + $0x78] sm:$0xff]
    %v497 = vld [vmem:[%s2 + $0x80] sm:$0xff]
    %v498 = vld [vmem:[%s2 + $0x88] sm:$0xff]
    %v499 = vld [vmem:[%s2 + $0x90] sm:$0xff]
    %v500 = vld [vmem:[%s2 + $0x98] sm:$0xff]
    %v501 = vld [vmem:[%s2 + $0xa0] sm:$0xff]
    %v502 = vld [vmem:[%s2 + $0xa8] sm:$0xff]
    %v503 = vld [vmem:[%s2 + $0xb0] sm:$0xff]
    %v504 = vld [vmem:[%s2 + $0xb8] sm:$0xff]
    %v505 = vld [vmem:[%s2 + $0xc0] sm:$0xff]
    %v506 = vpack.c.bf16 %v482, %v481
    %v507 = vpack.c.bf16 %v484, %v483
    %v508 = vpack.c.bf16 %v486, %v485
    %v509 = vpack.c.bf16 %v488, %v487
    %v510 = vpack.c.bf16 %v490, %v489
    %v511 = vpack.c.bf16 %v492, %v491
    %v512 = vpack.c.bf16 %v494, %v493
    %v513 = vpack.c.bf16 %v496, %v495
    %v514 = vpack.c.bf16 %v498, %v497
    %v515 = vpack.c.bf16 %v500, %v499
    %v516 = vpack.c.bf16 %v502, %v501
    %v517 = vpack.c.bf16 %v504, %v503
    %v518 = vpack.c.bf16 %v505, %v505
    %v519 = vld [vmem:[%s5] sm:$0xf]
    %v520 = vld [vmem:[%s5 + $0x4] sm:$0x1]
    %v523 = vunpack.c.l.b16 %v519
    %v524 = vunpack.c.l.b16 %v520
    %v525 = vpack.c.b16 %v524, %v523
    %vm526 = vcmask 80896
    %v528 = vsel %vm526, %v506, 0
    %v531 = vsel %vm526, %v507, 0
    %v534 = vsel %vm526, %v508, 0
    %v537 = vsel %vm526, %v509, 0
    %v540 = vsel %vm526, %v510, 0
    %v543 = vsel %vm526, %v511, 0
    %v546 = vsel %vm526, %v512, 0
    %v549 = vsel %vm526, %v513, 0
    %v552 = vsel %vm526, %v514, 0
    %v555 = vsel %vm526, %v515, 0
    %v558 = vsel %vm526, %v516, 0
    %v561 = vsel %vm526, %v517, 0
    %v564 = vsel %vm526, %v518, 0
    %vm566 = vcmask 1044480
    %v568 = vsel %vm566, %v525, 0
    %570 = vmatprep.subr.bf16.mxu0 0
    %571 = vmatpush1.bf16.msra.mxu0 %v568
    %572 = vmatprep.subr.bf16.mxu0 0
    %573 = vmatpush1.bf16.msra.mxu0 0
    %574 = vmatprep.subr.bf16.mxu0 0
    %575 = vmatpush1.bf16.msra.mxu0 0
    %576 = vmatprep.subr.bf16.mxu0 0
    %577 = vmatpush1.bf16.msra.mxu0 0
    %578 = vmatprep.subr.bf16.mxu0 0
    %579 = vmatpush1.bf16.msra.mxu0 0
    %580 = vmatprep.subr.bf16.mxu0 0
    %581 = vmatpush1.bf16.msra.mxu0 0
    %582 = vmatprep.subr.bf16.mxu0 0
    %583 = vmatpush1.bf16.msra.mxu0 0
    %584 = vmatprep.subr.bf16.mxu0 0
    %585 = vmatpush1.bf16.msra.mxu0 0
    %586 = vmatprep.subr.bf16.mxu0 0
    %587 = vmatpush1.bf16.msra.mxu0 0
    %588 = vmatprep.subr.bf16.mxu0 0
    %589 = vmatpush1.bf16.msra.mxu0 0
    %590 = vmatprep.subr.bf16.mxu0 0
    %591 = vmatpush1.bf16.msra.mxu0 0
    %592 = vmatprep.subr.bf16.mxu0 0
    %593 = vmatpush1.bf16.msra.mxu0 0
    %594 = vmatprep.subr.bf16.mxu0 0
    %595 = vmatpush1.bf16.msra.mxu0 0
    %596 = vmatprep.subr.bf16.mxu0 0
    %597 = vmatpush1.bf16.msra.mxu0 0
    %598 = vmatprep.subr.bf16.mxu0 0
    %599 = vmatpush1.bf16.msra.mxu0 0
    %600 = vmatprep.subr.bf16.mxu0 0
    %601 = vmatpush1.bf16.msra.mxu0 0
    %602 = vmatprep.mubr.bf16.mxu0 0
    %603 = vmatmul.mubr.bf16.gmra.mrb[0].mxu0 %v528
    %v604 = vpop.f32.mrb[0].mxu0
    %v605 = vadd.f32 0.0, %v604
    %v606 = vpop.f32.mrb[0].mxu0
    %v607 = vpop.f32.mrb[0].mxu0
    %v608 = vadd.f32 0.0, %v607
    %v609 = vpop.f32.mrb[0].mxu0
    %610 = vmatprep.mubr.bf16.mxu0 0
    %611 = vmatmul.mubr.bf16.gmra.mrb[0].mxu0 %v531
    %v612 = vpop.f32.mrb[0].mxu0
    %v613 = vadd.f32 0.0, %v612
    %v614 = vpop.f32.mrb[0].mxu0
    %v615 = vpop.f32.mrb[0].mxu0
    %v616 = vadd.f32 0.0, %v615
    %v617 = vpop.f32.mrb[0].mxu0
    %618 = vmatprep.mubr.bf16.mxu0 0
    %619 = vmatmul.mubr.bf16.gmra.mrb[0].mxu0 %v534
    %v620 = vpop.f32.mrb[0].mxu0
    %v621 = vadd.f32 0.0, %v620
    %v622 = vpop.f32.mrb[0].mxu0
    %v623 = vpop.f32.mrb[0].mxu0
    %v624 = vadd.f32 0.0, %v623
    %v625 = vpop.f32.mrb[0].mxu0
    %626 = vmatprep.mubr.bf16.mxu0 0
    %627 = vmatmul.mubr.bf16.gmra.mrb[0].mxu0 %v537
    %v628 = vpop.f32.mrb[0].mxu0
    %v629 = vadd.f32 0.0, %v628
    %v630 = vpop.f32.mrb[0].mxu0
    %v631 = vpop.f32.mrb[0].mxu0
    %v632 = vadd.f32 0.0, %v631
    %v633 = vpop.f32.mrb[0].mxu0
    %634 = vmatprep.mubr.bf16.mxu0 0
    %635 = vmatmul.mubr.bf16.gmra.mrb[0].mxu0 %v540
    %v636 = vpop.f32.mrb[0].mxu0
    %v637 = vadd.f32 0.0, %v636
    %v638 = vpop.f32.mrb[0].mxu0
    %v639 = vpop.f32.mrb[0].mxu0
    %v640 = vadd.f32 0.0, %v639
    %v641 = vpop.f32.mrb[0].mxu0
    %642 = vmatprep.mubr.bf16.mxu0 0
    %643 = vmatmul.mubr.bf16.gmra.mrb[0].mxu0 %v543
    %v644 = vpop.f32.mrb[0].mxu0
    %v645 = vadd.f32 0.0, %v644
    %v646 = vpop.f32.mrb[0].mxu0
    %v647 = vpop.f32.mrb[0].mxu0
    %v648 = vadd.f32 0.0, %v647
    %v649 = vpop.f32.mrb[0].mxu0
    %650 = vmatprep.mubr.bf16.mxu0 0
    %651 = vmatmul.mubr.bf16.gmra.mrb[0].mxu0 %v546
    %v652 = vpop.f32.mrb[0].mxu0
    %v653 = vadd.f32 0.0, %v652
    %v654 = vpop.f32.mrb[0].mxu0
    %v655 = vpop.f32.mrb[0].mxu0
    %v656 = vadd.f32 0.0, %v655
    %v657 = vpop.f32.mrb[0].mxu0
    %658 = vmatprep.mubr.bf16.mxu0 0
    %659 = vmatmul.mubr.bf16.gmra.mrb[0].mxu0 %v549
    %v660 = vpop.f32.mrb[0].mxu0
    %v661 = vadd.f32 0.0, %v660
    %v662 = vpop.f32.mrb[0].mxu0
    %v663 = vpop.f32.mrb[0].mxu0
    %v664 = vadd.f32 0.0, %v663
    %v665 = vpop.f32.mrb[0].mxu0
    %666 = vmatprep.mubr.bf16.mxu0 0
    %667 = vmatmul.mubr.bf16.gmra.mrb[0].mxu0 %v552
    %v668 = vpop.f32.mrb[0].mxu0
    %v669 = vadd.f32 0.0, %v668
    %v670 = vpop.f32.mrb[0].mxu0
    %v671 = vpop.f32.mrb[0].mxu0
    %v672 = vadd.f32 0.0, %v671
    %v673 = vpop.f32.mrb[0].mxu0
    %674 = vmatprep.mubr.bf16.mxu0 0
    %675 = vmatmul.mubr.bf16.gmra.mrb[0].mxu0 %v555
    %v676 = vpop.f32.mrb[0].mxu0
    %v677 = vadd.f32 0.0, %v676
    %v678 = vpop.f32.mrb[0].mxu0
    %v679 = vpop.f32.mrb[0].mxu0
    %v680 = vadd.f32 0.0, %v679
    %v681 = vpop.f32.mrb[0].mxu0
    %682 = vmatprep.mubr.bf16.mxu0 0
    %683 = vmatmul.mubr.bf16.gmra.mrb[0].mxu0 %v558
    %v684 = vpop.f32.mrb[0].mxu0
    %v685 = vadd.f32 0.0, %v684
    %v686 = vpop.f32.mrb[0].mxu0
    %v687 = vpop.f32.mrb[0].mxu0
    %v688 = vadd.f32 0.0, %v687
    %v689 = vpop.f32.mrb[0].mxu0
    %690 = vmatprep.mubr.bf16.mxu0 0
    %691 = vmatmul.mubr.bf16.gmra.mrb[0].mxu0 %v561
    %v692 = vpop.f32.mrb[0].mxu0
    %v693 = vadd.f32 0.0, %v692
    %v694 = vpop.f32.mrb[0].mxu0
    %v695 = vpop.f32.mrb[0].mxu0
    %v696 = vadd.f32 0.0, %v695
    %v697 = vpop.f32.mrb[0].mxu0
    %698 = vmatprep.mubr.bf16.mxu0 0
    %699 = vmatmul.mubr.bf16.gmra.mrb[0].mxu0 %v564
    %v700 = vpop.f32.mrb[0].mxu0
    %v701 = vadd.f32 0.0, %v700
    %v702 = vpop.f32.mrb[0].mxu0
    %v703 = vpop.f32.mrb[0].mxu0
    %v704 = vpop.f32.mrb[0].mxu0
    %705 = vdwg.mxu0
    %v706 = vadd.f32 %v380, %v605
    %v707 = vadd.f32 %v383, %v608
    %v708 = vadd.f32 %v388, %v613
    %v709 = vadd.f32 %v391, %v616
    %v710 = vadd.f32 %v396, %v621
    %v711 = vadd.f32 %v399, %v624
    %v712 = vadd.f32 %v404, %v629
    %v713 = vadd.f32 %v407, %v632
    %v714 = vadd.f32 %v412, %v637
    %v715 = vadd.f32 %v415, %v640
    %v716 = vadd.f32 %v420, %v645
    %v717 = vadd.f32 %v423, %v648
    %v718 = vadd.f32 %v428, %v653
    %v719 = vadd.f32 %v431, %v656
    %v720 = vadd.f32 %v436, %v661
    %v721 = vadd.f32 %v439, %v664
    %v722 = vadd.f32 %v444, %v669
    %v723 = vadd.f32 %v447, %v672
    %v724 = vadd.f32 %v452, %v677
    %v725 = vadd.f32 %v455, %v680
    %v726 = vadd.f32 %v460, %v685
    %v727 = vadd.f32 %v463, %v688
    %v728 = vadd.f32 %v468, %v693
    %v729 = vadd.f32 %v471, %v696
    %v730 = vadd.f32 %v476, %v701
    %v731 = vld [vmem:[%s6] sm:$0x1]
    %v733 = vlaneseq
    %v734 = vshrl.u32 %v733, 7
    %v735 = vsub.s32 0, %v734
    %v736 = vrot.slane %v731, %v735
    %v738 = vadd.f32 %v706, %v736
    %v739 = vadd.f32 %v707, %v736
    %v740 = vadd.f32 %v708, %v736
    %v741 = vadd.f32 %v709, %v736
    %v742 = vadd.f32 %v710, %v736
    %v743 = vadd.f32 %v711, %v736
    %v744 = vadd.f32 %v712, %v736
    %v745 = vadd.f32 %v713, %v736
    %v746 = vadd.f32 %v714, %v736
    %v747 = vadd.f32 %v715, %v736
    %v748 = vadd.f32 %v716, %v736
    %v749 = vadd.f32 %v717, %v736
    %v750 = vadd.f32 %v718, %v736
    %v751 = vadd.f32 %v719, %v736
    %v752 = vadd.f32 %v720, %v736
    %v753 = vadd.f32 %v721, %v736
    %v754 = vadd.f32 %v722, %v736
    %v755 = vadd.f32 %v723, %v736
    %v756 = vadd.f32 %v724, %v736
    %v757 = vadd.f32 %v725, %v736
    %v758 = vadd.f32 %v726, %v736
    %v759 = vadd.f32 %v727, %v736
    %v760 = vadd.f32 %v728, %v736
    %v761 = vadd.f32 %v729, %v736
    %v762 = vadd.f32 %v730, %v736
    %v763 = vpack.c.bf16 %v739, %v738
    %v764 = vpack.c.bf16 %v741, %v740
    %v765 = vpack.c.bf16 %v743, %v742
    %v766 = vpack.c.bf16 %v745, %v744
    %v767 = vpack.c.bf16 %v747, %v746
    %v768 = vpack.c.bf16 %v749, %v748
    %v769 = vpack.c.bf16 %v751, %v750
    %v770 = vpack.c.bf16 %v753, %v752
    %v771 = vpack.c.bf16 %v755, %v754
    %v772 = vpack.c.bf16 %v757, %v756
    %v773 = vpack.c.bf16 %v759, %v758
    %v774 = vpack.c.bf16 %v761, %v760
    %v775 = vpack.c.bf16 %v762, %v762
    %v776 = vmax.bf16 %v763, 0
    %v777 = vmax.bf16 %v764, 0
    %v778 = vmax.bf16 %v765, 0
    %v779 = vmax.bf16 %v766, 0
    %v780 = vmax.bf16 %v767, 0
    %v781 = vmax.bf16 %v768, 0
    %v782 = vmax.bf16 %v769, 0
    %v783 = vmax.bf16 %v770, 0
    %v784 = vmax.bf16 %v771, 0
    %v785 = vmax.bf16 %v772, 0
    %v786 = vmax.bf16 %v773, 0
    %v787 = vmax.bf16 %v774, 0
    %v788 = vmax.bf16 %v775, 0
    %v789 = vld [vmem:[%s7] sm:$0xf]
    %v790 = vld [vmem:[%s7 + $0x4] sm:$0xf]
    %v791 = vld [vmem:[%s7 + $0x8] sm:$0xf]
    %v792 = vld [vmem:[%s7 + $0xc] sm:$0xf]
    %v793 = vld [vmem:[%s7 + $0x10] sm:$0xf]
    %v794 = vld [vmem:[%s7 + $0x14] sm:$0xf]
    %v795 = vld [vmem:[%s7 + $0x18] sm:$0xf]
    %v796 = vld [vmem:[%s7 + $0x1c] sm:$0xf]
    %v797 = vld [vmem:[%s7 + $0x20] sm:$0xf]
    %v798 = vld [vmem:[%s7 + $0x24] sm:$0xf]
    %v799 = vld [vmem:[%s7 + $0x28] sm:$0xf]
    %v800 = vld [vmem:[%s7 + $0x2c] sm:$0xf]
    %v801 = vld [vmem:[%s7 + $0x30] sm:$0xf]
    %v802 = vld [vmem:[%s7 + $0x34] sm:$0xf]
    %v803 = vld [vmem:[%s7 + $0x38] sm:$0xf]
    %v804 = vld [vmem:[%s7 + $0x3c] sm:$0xf]
    %v805 = vld [vmem:[%s8] sm:$0x1]
    %v807 = vlaneseq
    %v808 = vshrl.u32 %v807, 7
    %v809 = vsub.s32 0, %v808
    %v810 = vrot.slane %v805, %v809
    %v828 = vunpack.c.l.b16 %v789
    %v829 = vunpack.c.l.b16 %v790
    %v830 = vunpack.c.l.b16 %v791
    %v831 = vunpack.c.l.b16 %v792
    %v832 = vunpack.c.l.b16 %v793
    %v833 = vunpack.c.l.b16 %v794
    %v834 = vunpack.c.l.b16 %v795
    %v835 = vunpack.c.l.b16 %v796
    %v836 = vunpack.c.l.b16 %v797
    %v837 = vunpack.c.l.b16 %v798
    %v838 = vunpack.c.l.b16 %v799
    %v839 = vunpack.c.l.b16 %v800
    %v840 = vunpack.c.l.b16 %v801
    %v841 = vunpack.c.l.b16 %v802
    %v842 = vunpack.c.l.b16 %v803
    %v843 = vunpack.c.l.b16 %v804
    %v844 = vpack.c.b16 %v829, %v828
    %v845 = vpack.c.b16 %v831, %v830
    %v846 = vpack.c.b16 %v833, %v832
    %v847 = vpack.c.b16 %v835, %v834
    %v848 = vpack.c.b16 %v837, %v836
    %v849 = vpack.c.b16 %v839, %v838
    %v850 = vpack.c.b16 %v841, %v840
    %v851 = vpack.c.b16 %v843, %v842
    %860 = vmatprep.subr.bf16.mxu0 0
    %861 = vmatpush1.bf16.msra.mxu0 %v844
    %862 = vmatprep.subr.bf16.mxu0 0
    %863 = vmatpush1.bf16.msra.mxu0 %v845
    %864 = vmatprep.subr.bf16.mxu0 0
    %865 = vmatpush1.bf16.msra.mxu0 %v846
    %866 = vmatprep.subr.bf16.mxu0 0
    %867 = vmatpush1.bf16.msra.mxu0 %v847
    %868 = vmatprep.subr.bf16.mxu0 0
    %869 = vmatpush1.bf16.msra.mxu0 %v848
    %870 = vmatprep.subr.bf16.mxu0 0
    %871 = vmatpush1.bf16.msra.mxu0 %v849
    %872 = vmatprep.subr.bf16.mxu0 0
    %873 = vmatpush1.bf16.msra.mxu0 %v850
    %874 = vmatprep.subr.bf16.mxu0 0
    %875 = vmatpush1.bf16.msra.mxu0 %v851
    %876 = vmatprep.subr.bf16.mxu0 0
    %877 = vmatpush1.bf16.msra.mxu0 0
    %878 = vmatprep.subr.bf16.mxu0 0
    %879 = vmatpush1.bf16.msra.mxu0 0
    %880 = vmatprep.subr.bf16.mxu0 0
    %881 = vmatpush1.bf16.msra.mxu0 0
    %882 = vmatprep.subr.bf16.mxu0 0
    %883 = vmatpush1.bf16.msra.mxu0 0
    %884 = vmatprep.subr.bf16.mxu0 0
    %885 = vmatpush1.bf16.msra.mxu0 0
    %886 = vmatprep.subr.bf16.mxu0 0
    %887 = vmatpush1.bf16.msra.mxu0 0
    %888 = vmatprep.subr.bf16.mxu0 0
    %889 = vmatpush1.bf16.msra.mxu0 0
    %890 = vmatprep.subr.bf16.mxu0 0
    %891 = vmatpush1.bf16.msra.mxu0 0
    %892 = vmatprep.mubr.bf16.mxu0 0
    %893 = vmatmul.mubr.bf16.gmra.mrb[0].mxu0 %v776
    %v894 = vpop.f32.mrb[0].mxu0
    %v895 = vadd.f32 %v810, %v894
    %v896 = vpop.f32.mrb[0].mxu0
    %v897 = vpop.f32.mrb[0].mxu0
    %v898 = vadd.f32 %v810, %v897
    %v899 = vpop.f32.mrb[0].mxu0
    %900 = vmatprep.mubr.bf16.mxu0 0
    %901 = vmatmul.mubr.bf16.gmra.mrb[0].mxu0 %v777
    %v902 = vpop.f32.mrb[0].mxu0
    %v903 = vadd.f32 %v810, %v902
    %v904 = vpop.f32.mrb[0].mxu0
    %v905 = vpop.f32.mrb[0].mxu0
    %v906 = vadd.f32 %v810, %v905
    %v907 = vpop.f32.mrb[0].mxu0
    %908 = vmatprep.mubr.bf16.mxu0 0
    %909 = vmatmul.mubr.bf16.gmra.mrb[0].mxu0 %v778
    %v910 = vpop.f32.mrb[0].mxu0
    %v911 = vadd.f32 %v810, %v910
    %v912 = vpop.f32.mrb[0].mxu0
    %v913 = vpop.f32.mrb[0].mxu0
    %v914 = vadd.f32 %v810, %v913
    %v915 = vpop.f32.mrb[0].mxu0
    %916 = vmatprep.mubr.bf16.mxu0 0
    %917 = vmatmul.mubr.bf16.gmra.mrb[0].mxu0 %v779
    %v918 = vpop.f32.mrb[0].mxu0
    %v919 = vadd.f32 %v810, %v918
    %v920 = vpop.f32.mrb[0].mxu0
    %v921 = vpop.f32.mrb[0].mxu0
    %v922 = vadd.f32 %v810, %v921
    %v923 = vpop.f32.mrb[0].mxu0
    %924 = vmatprep.mubr.bf16.mxu0 0
    %925 = vmatmul.mubr.bf16.gmra.mrb[0].mxu0 %v780
    %v926 = vpop.f32.mrb[0].mxu0
    %v927 = vadd.f32 %v810, %v926
    %v928 = vpop.f32.mrb[0].mxu0
    %v929 = vpop.f32.mrb[0].mxu0
    %v930 = vadd.f32 %v810, %v929
    %v931 = vpop.f32.mrb[0].mxu0
    %932 = vmatprep.mubr.bf16.mxu0 0
    %933 = vmatmul.mubr.bf16.gmra.mrb[0].mxu0 %v781
    %v934 = vpop.f32.mrb[0].mxu0
    %v935 = vadd.f32 %v810, %v934
    %v936 = vpop.f32.mrb[0].mxu0
    %v937 = vpop.f32.mrb[0].mxu0
    %v938 = vadd.f32 %v810, %v937
    %v939 = vpop.f32.mrb[0].mxu0
    %940 = vmatprep.mubr.bf16.mxu0 0
    %941 = vmatmul.mubr.bf16.gmra.mrb[0].mxu0 %v782
    %v942 = vpop.f32.mrb[0].mxu0
    %v943 = vadd.f32 %v810, %v942
    %v944 = vpop.f32.mrb[0].mxu0
    %v945 = vpop.f32.mrb[0].mxu0
    %v946 = vadd.f32 %v810, %v945
    %v947 = vpop.f32.mrb[0].mxu0
    %948 = vmatprep.mubr.bf16.mxu0 0
    %949 = vmatmul.mubr.bf16.gmra.mrb[0].mxu0 %v783
    %v950 = vpop.f32.mrb[0].mxu0
    %v951 = vadd.f32 %v810, %v950
    %v952 = vpop.f32.mrb[0].mxu0
    %v953 = vpop.f32.mrb[0].mxu0
    %v954 = vadd.f32 %v810, %v953
    %v955 = vpop.f32.mrb[0].mxu0
    %956 = vmatprep.mubr.bf16.mxu0 0
    %957 = vmatmul.mubr.bf16.gmra.mrb[0].mxu0 %v784
    %v958 = vpop.f32.mrb[0].mxu0
    %v959 = vadd.f32 %v810, %v958
    %v960 = vpop.f32.mrb[0].mxu0
    %v961 = vpop.f32.mrb[0].mxu0
    %v962 = vadd.f32 %v810, %v961
    %v963 = vpop.f32.mrb[0].mxu0
    %964 = vmatprep.mubr.bf16.mxu0 0
    %965 = vmatmul.mubr.bf16.gmra.mrb[0].mxu0 %v785
    %v966 = vpop.f32.mrb[0].mxu0
    %v967 = vadd.f32 %v810, %v966
    %v968 = vpop.f32.mrb[0].mxu0
    %v969 = vpop.f32.mrb[0].mxu0
    %v970 = vadd.f32 %v810, %v969
    %v971 = vpop.f32.mrb[0].mxu0
    %972 = vmatprep.mubr.bf16.mxu0 0
    %973 = vmatmul.mubr.bf16.gmra.mrb[0].mxu0 %v786
    %v974 = vpop.f32.mrb[0].mxu0
    %v975 = vadd.f32 %v810, %v974
    %v976 = vpop.f32.mrb[0].mxu0
    %v977 = vpop.f32.mrb[0].mxu0
    %v978 = vadd.f32 %v810, %v977
    %v979 = vpop.f32.mrb[0].mxu0
    %980 = vmatprep.mubr.bf16.mxu0 0
    %981 = vmatmul.mubr.bf16.gmra.mrb[0].mxu0 %v787
    %v982 = vpop.f32.mrb[0].mxu0
    %v983 = vadd.f32 %v810, %v982
    %v984 = vpop.f32.mrb[0].mxu0
    %v985 = vpop.f32.mrb[0].mxu0
    %v986 = vadd.f32 %v810, %v985
    %v987 = vpop.f32.mrb[0].mxu0
    %988 = vmatprep.mubr.bf16.mxu0 0
    %989 = vmatmul.mubr.bf16.gmra.mrb[0].mxu0 %v788
    %v990 = vpop.f32.mrb[0].mxu0
    %v991 = vadd.f32 %v810, %v990
    %v992 = vpop.f32.mrb[0].mxu0
    %v993 = vpop.f32.mrb[0].mxu0
    %v994 = vpop.f32.mrb[0].mxu0
    %995 = vdwg.mxu0
    %v996 = vpack.c.bf16 %v898, %v895
    %v997 = vpack.c.bf16 %v906, %v903
    %v998 = vpack.c.bf16 %v914, %v911
    %v999 = vpack.c.bf16 %v922, %v919
    %v1000 = vpack.c.bf16 %v930, %v927
    %v1001 = vpack.c.bf16 %v938, %v935
    %v1002 = vpack.c.bf16 %v946, %v943
    %v1003 = vpack.c.bf16 %v954, %v951
    %v1004 = vpack.c.bf16 %v962, %v959
    %v1005 = vpack.c.bf16 %v970, %v967
    %v1006 = vpack.c.bf16 %v978, %v975
    %v1007 = vpack.c.bf16 %v986, %v983
    %v1008 = vpack.c.bf16 %v991, %v991
    %v1009 = vmax.bf16 %v996, 0
    %v1010 = vmax.bf16 %v997, 0
    %v1011 = vmax.bf16 %v998, 0
    %v1012 = vmax.bf16 %v999, 0
    %v1013 = vmax.bf16 %v1000, 0
    %v1014 = vmax.bf16 %v1001, 0
    %v1015 = vmax.bf16 %v1002, 0
    %v1016 = vmax.bf16 %v1003, 0
    %v1017 = vmax.bf16 %v1004, 0
    %v1018 = vmax.bf16 %v1005, 0
    %v1019 = vmax.bf16 %v1006, 0
    %v1020 = vmax.bf16 %v1007, 0
    %v1021 = vmax.bf16 %v1008, 0
    %v1022 = vld [vmem:[%s9] sm:$0xf]
    %v1023 = vld [vmem:[%s9 + $0x4] sm:$0xf]
    %v1024 = vld [vmem:[%s9 + $0x8] sm:$0xf]
    %v1025 = vld [vmem:[%s9 + $0xc] sm:$0xf]
    %v1026 = vld [vmem:[%s9 + $0x10] sm:$0xf]
    %v1027 = vld [vmem:[%s9 + $0x14] sm:$0xf]
    %v1028 = vld [vmem:[%s9 + $0x18] sm:$0xf]
    %v1029 = vld [vmem:[%s9 + $0x1c] sm:$0xf]
    %v1030 = vld [vmem:[%s9 + $0x20] sm:$0xf]
    %v1031 = vld [vmem:[%s9 + $0x24] sm:$0xf]
    %v1032 = vld [vmem:[%s9 + $0x28] sm:$0xf]
    %v1033 = vld [vmem:[%s9 + $0x2c] sm:$0xf]
    %v1034 = vld [vmem:[%s9 + $0x30] sm:$0xf]
    %v1035 = vld [vmem:[%s9 + $0x34] sm:$0xf]
    %v1036 = vld [vmem:[%s9 + $0x38] sm:$0xf]
    %v1037 = vld [vmem:[%s9 + $0x3c] sm:$0xf]
    %v1038 = vld [vmem:[%s10] sm:$0x1]
    %v1040 = vlaneseq
    %v1041 = vshrl.u32 %v1040, 7
    %v1042 = vsub.s32 0, %v1041
    %v1043 = vrot.slane %v1038, %v1042
    %v1061 = vunpack.c.l.b16 %v1022
    %v1062 = vunpack.c.l.b16 %v1023
    %v1063 = vunpack.c.l.b16 %v1024
    %v1064 = vunpack.c.l.b16 %v1025
    %v1065 = vunpack.c.l.b16 %v1026
    %v1066 = vunpack.c.l.b16 %v1027
    %v1067 = vunpack.c.l.b16 %v1028
    %v1068 = vunpack.c.l.b16 %v1029
    %v1069 = vunpack.c.l.b16 %v1030
    %v1070 = vunpack.c.l.b16 %v1031
    %v1071 = vunpack.c.l.b16 %v1032
    %v1072 = vunpack.c.l.b16 %v1033
    %v1073 = vunpack.c.l.b16 %v1034
    %v1074 = vunpack.c.l.b16 %v1035
    %v1075 = vunpack.c.l.b16 %v1036
    %v1076 = vunpack.c.l.b16 %v1037
    %v1077 = vpack.c.b16 %v1062, %v1061
    %v1078 = vpack.c.b16 %v1064, %v1063
    %v1079 = vpack.c.b16 %v1066, %v1065
    %v1080 = vpack.c.b16 %v1068, %v1067
    %v1081 = vpack.c.b16 %v1070, %v1069
    %v1082 = vpack.c.b16 %v1072, %v1071
    %v1083 = vpack.c.b16 %v1074, %v1073
    %v1084 = vpack.c.b16 %v1076, %v1075
    %1093 = vmatprep.subr.bf16.mxu0 0
    %1094 = vmatpush1.bf16.msra.mxu0 %v1077
    %1095 = vmatprep.subr.bf16.mxu0 0
    %1096 = vmatpush1.bf16.msra.mxu0 %v1078
    %1097 = vmatprep.subr.bf16.mxu0 0
    %1098 = vmatpush1.bf16.msra.mxu0 %v1079
    %1099 = vmatprep.subr.bf16.mxu0 0
    %1100 = vmatpush1.bf16.msra.mxu0 %v1080
    %1101 = vmatprep.subr.bf16.mxu0 0
    %1102 = vmatpush1.bf16.msra.mxu0 %v1081
    %1103 = vmatprep.subr.bf16.mxu0 0
    %1104 = vmatpush1.bf16.msra.mxu0 %v1082
    %1105 = vmatprep.subr.bf16.mxu0 0
    %1106 = vmatpush1.bf16.msra.mxu0 %v1083
    %1107 = vmatprep.subr.bf16.mxu0 0
    %1108 = vmatpush1.bf16.msra.mxu0 %v1084
    %1109 = vmatprep.subr.bf16.mxu0 0
    %1110 = vmatpush1.bf16.msra.mxu0 0
    %1111 = vmatprep.subr.bf16.mxu0 0
    %1112 = vmatpush1.bf16.msra.mxu0 0
    %1113 = vmatprep.subr.bf16.mxu0 0
    %1114 = vmatpush1.bf16.msra.mxu0 0
    %1115 = vmatprep.subr.bf16.mxu0 0
    %1116 = vmatpush1.bf16.msra.mxu0 0
    %1117 = vmatprep.subr.bf16.mxu0 0
    %1118 = vmatpush1.bf16.msra.mxu0 0
    %1119 = vmatprep.subr.bf16.mxu0 0
    %1120 = vmatpush1.bf16.msra.mxu0 0
    %1121 = vmatprep.subr.bf16.mxu0 0
    %1122 = vmatpush1.bf16.msra.mxu0 0
    %1123 = vmatprep.subr.bf16.mxu0 0
    %1124 = vmatpush1.bf16.msra.mxu0 0
    %1125 = vmatprep.mubr.bf16.mxu0 0
    %1126 = vmatmul.mubr.bf16.gmra.mrb[0].mxu0 %v1009
    %v1127 = vpop.f32.mrb[0].mxu0
    %v1128 = vadd.f32 %v1043, %v1127
    %v1129 = vpop.f32.mrb[0].mxu0
    %v1130 = vpop.f32.mrb[0].mxu0
    %v1131 = vadd.f32 %v1043, %v1130
    %v1132 = vpop.f32.mrb[0].mxu0
    %1133 = vmatprep.mubr.bf16.mxu0 0
    %1134 = vmatmul.mubr.bf16.gmra.mrb[0].mxu0 %v1010
    %v1135 = vpop.f32.mrb[0].mxu0
    %v1136 = vadd.f32 %v1043, %v1135
    %v1137 = vpop.f32.mrb[0].mxu0
    %v1138 = vpop.f32.mrb[0].mxu0
    %v1139 = vadd.f32 %v1043, %v1138
    %v1140 = vpop.f32.mrb[0].mxu0
    %1141 = vmatprep.mubr.bf16.mxu0 0
    %1142 = vmatmul.mubr.bf16.gmra.mrb[0].mxu0 %v1011
    %v1143 = vpop.f32.mrb[0].mxu0
    %v1144 = vadd.f32 %v1043, %v1143
    %v1145 = vpop.f32.mrb[0].mxu0
    %v1146 = vpop.f32.mrb[0].mxu0
    %v1147 = vadd.f32 %v1043, %v1146
    %v1148 = vpop.f32.mrb[0].mxu0
    %1149 = vmatprep.mubr.bf16.mxu0 0
    %1150 = vmatmul.mubr.bf16.gmra.mrb[0].mxu0 %v1012
    %v1151 = vpop.f32.mrb[0].mxu0
    %v1152 = vadd.f32 %v1043, %v1151
    %v1153 = vpop.f32.mrb[0].mxu0
    %v1154 = vpop.f32.mrb[0].mxu0
    %v1155 = vadd.f32 %v1043, %v1154
    %v1156 = vpop.f32.mrb[0].mxu0
    %1157 = vmatprep.mubr.bf16.mxu0 0
    %1158 = vmatmul.mubr.bf16.gmra.mrb[0].mxu0 %v1013
    %v1159 = vpop.f32.mrb[0].mxu0
    %v1160 = vadd.f32 %v1043, %v1159
    %v1161 = vpop.f32.mrb[0].mxu0
    %v1162 = vpop.f32.mrb[0].mxu0
    %v1163 = vadd.f32 %v1043, %v1162
    %v1164 = vpop.f32.mrb[0].mxu0
    %1165 = vmatprep.mubr.bf16.mxu0 0
    %1166 = vmatmul.mubr.bf16.gmra.mrb[0].mxu0 %v1014
    %v1167 = vpop.f32.mrb[0].mxu0
    %v1168 = vadd.f32 %v1043, %v1167
    %v1169 = vpop.f32.mrb[0].mxu0
    %v1170 = vpop.f32.mrb[0].mxu0
    %v1171 = vadd.f32 %v1043, %v1170
    %v1172 = vpop.f32.mrb[0].mxu0
    %1173 = vmatprep.mubr.bf16.mxu0 0
    %1174 = vmatmul.mubr.bf16.gmra.mrb[0].mxu0 %v1015
    %v1175 = vpop.f32.mrb[0].mxu0
    %v1176 = vadd.f32 %v1043, %v1175
    %v1177 = vpop.f32.mrb[0].mxu0
    %v1178 = vpop.f32.mrb[0].mxu0
    %v1179 = vadd.f32 %v1043, %v1178
    %v1180 = vpop.f32.mrb[0].mxu0
    %1181 = vmatprep.mubr.bf16.mxu0 0
    %1182 = vmatmul.mubr.bf16.gmra.mrb[0].mxu0 %v1016
    %v1183 = vpop.f32.mrb[0].mxu0
    %v1184 = vadd.f32 %v1043, %v1183
    %v1185 = vpop.f32.mrb[0].mxu0
    %v1186 = vpop.f32.mrb[0].mxu0
    %v1187 = vadd.f32 %v1043, %v1186
    %v1188 = vpop.f32.mrb[0].mxu0
    %1189 = vmatprep.mubr.bf16.mxu0 0
    %1190 = vmatmul.mubr.bf16.gmra.mrb[0].mxu0 %v1017
    %v1191 = vpop.f32.mrb[0].mxu0
    %v1192 = vadd.f32 %v1043, %v1191
    %v1193 = vpop.f32.mrb[0].mxu0
    %v1194 = vpop.f32.mrb[0].mxu0
    %v1195 = vadd.f32 %v1043, %v1194
    %v1196 = vpop.f32.mrb[0].mxu0
    %1197 = vmatprep.mubr.bf16.mxu0 0
    %1198 = vmatmul.mubr.bf16.gmra.mrb[0].mxu0 %v1018
    %v1199 = vpop.f32.mrb[0].mxu0
    %v1200 = vadd.f32 %v1043, %v1199
    %v1201 = vpop.f32.mrb[0].mxu0
    %v1202 = vpop.f32.mrb[0].mxu0
    %v1203 = vadd.f32 %v1043, %v1202
    %v1204 = vpop.f32.mrb[0].mxu0
    %1205 = vmatprep.mubr.bf16.mxu0 0
    %1206 = vmatmul.mubr.bf16.gmra.mrb[0].mxu0 %v1019
    %v1207 = vpop.f32.mrb[0].mxu0
    %v1208 = vadd.f32 %v1043, %v1207
    %v1209 = vpop.f32.mrb[0].mxu0
    %v1210 = vpop.f32.mrb[0].mxu0
    %v1211 = vadd.f32 %v1043, %v1210
    %v1212 = vpop.f32.mrb[0].mxu0
    %1213 = vmatprep.mubr.bf16.mxu0 0
    %1214 = vmatmul.mubr.bf16.gmra.mrb[0].mxu0 %v1020
    %v1215 = vpop.f32.mrb[0].mxu0
    %v1216 = vadd.f32 %v1043, %v1215
    %v1217 = vpop.f32.mrb[0].mxu0
    %v1218 = vpop.f32.mrb[0].mxu0
    %v1219 = vadd.f32 %v1043, %v1218
    %v1220 = vpop.f32.mrb[0].mxu0
    %1221 = vmatprep.mubr.bf16.mxu0 0
    %1222 = vmatmul.mubr.bf16.gmra.mrb[0].mxu0 %v1021
    %v1223 = vpop.f32.mrb[0].mxu0
    %v1224 = vadd.f32 %v1043, %v1223
    %v1225 = vpop.f32.mrb[0].mxu0
    %v1226 = vpop.f32.mrb[0].mxu0
    %v1227 = vpop.f32.mrb[0].mxu0
    %1228 = vdwg.mxu0
    %1229 = vst [vmem:[#allocation2] sm:$0xff] %v1128
    %1230 = vst [vmem:[#allocation2 + $0x8] sm:$0xff] %v1131
    %1231 = vst [vmem:[#allocation2 + $0x10] sm:$0xff] %v1136
    %1232 = vst [vmem:[#allocation2 + $0x18] sm:$0xff] %v1139
    %1233 = vst [vmem:[#allocation2 + $0x20] sm:$0xff] %v1144
    %1234 = vst [vmem:[#allocation2 + $0x28] sm:$0xff] %v1147
    %1235 = vst [vmem:[#allocation2 + $0x30] sm:$0xff] %v1152
    %1236 = vst [vmem:[#allocation2 + $0x38] sm:$0xff] %v1155
    %1237 = vst [vmem:[#allocation2 + $0x40] sm:$0xff] %v1160
    %1238 = vst [vmem:[#allocation2 + $0x48] sm:$0xff] %v1163
    %1239 = vst [vmem:[#allocation2 + $0x50] sm:$0xff] %v1168
    %1240 = vst [vmem:[#allocation2 + $0x58] sm:$0xff] %v1171
    %1241 = vst [vmem:[#allocation2 + $0x60] sm:$0xff] %v1176
    %1242 = vst [vmem:[#allocation2 + $0x68] sm:$0xff] %v1179
    %1243 = vst [vmem:[#allocation2 + $0x70] sm:$0xff] %v1184
    %1244 = vst [vmem:[#allocation2 + $0x78] sm:$0xff] %v1187
    %1245 = vst [vmem:[#allocation2 + $0x80] sm:$0xff] %v1192
    %1246 = vst [vmem:[#allocation2 + $0x88] sm:$0xff] %v1195
    %1247 = vst [vmem:[#allocation2 + $0x90] sm:$0xff] %v1200
    %1248 = vst [vmem:[#allocation2 + $0x98] sm:$0xff] %v1203
    %1249 = vst [vmem:[#allocation2 + $0xa0] sm:$0xff] %v1208
    %1250 = vst [vmem:[#allocation2 + $0xa8] sm:$0xff] %v1211
    %1251 = vst [vmem:[#allocation2 + $0xb0] sm:$0xff] %v1216
    %1252 = vst [vmem:[#allocation2 + $0xb8] sm:$0xff] %v1219
    %1253 = vst [vmem:[#allocation2 + $0xc0] sm:$0xff] %v1224
    // Predicated region
    $region46: #{tpu_custom_call.1} parent=1 // pred_check
      _
    $region47: #{tpu_custom_call.1} parent=1 // pred_check_branch
      %1255 = sbr.rel (0) target = $region49
    $region48: #{tpu_custom_call.1} parent=1 // pred_region
      %s1257 = ssub.s32 3200, 3200
      %1258 = vsyncadd [#allocation3], %s1257
      %s1259 = sshll.u32 [#allocation2], 4
      %s1260 = int_to_ptr.vmem [resolvable:$true] %s1259
      %1265 = dma.vmem_to_hbm [thread:$0]  %s1260, 3200, %s11, [#allocation3], 128, 128, 8
    $region49: #{tpu_custom_call.1} parent=1 // pred_fallthru
      _
    // Predicated region
    $region50: #{tpu_custom_call.1} parent=1 // pred_check
      _
    $region51: #{tpu_custom_call.1} parent=1 // pred_check_branch
      %1267 = sbr.rel (0) target = $region53
    $region52: #{tpu_custom_call.1} parent=1 // pred_region
      %1268 = dma.done [#allocation3], 3200
    $region53: #{tpu_custom_call.1} parent=1 // pred_fallthru
      _
    %1269 = vsyncpa [#allocation3], 1

</llo_original>
